<compile_context>
chip_gen: v6e
topology: v6e:2x2x1
jax: 0.10.0
libtpu: 0.0.40
codegen_flags: <defaults>
</compile_context>

<pallas_src>
import jax
import jax.numpy as jnp
from jax.experimental import pallas as pl
from jax.experimental.pallas import tpu as pltpu


def gcn_classifier_kernel(a_ref, w1_ref, b1_ref, w2_ref, b2_ref, wc_ref, bc_ref,
                          out_ref):
    A = a_ref[...].astype(jnp.float32)             # (G, N, N); A[g,i,j]: edge j -> i
    G, N, _ = A.shape
    H = w2_ref.shape[0]

    # ---- degrees via reductions (XLU), DGL 'both' norm with degree clamp >= 1
    in_deg = jnp.sum(A, axis=2)                    # (G, N)  in-degree of node i
    out_deg = jnp.sum(A, axis=1)                   # (G, N)  out-degree of node j
    in_norm_2d = jax.lax.rsqrt(jnp.maximum(in_deg, 1.0))    # (G, N)
    out_norm_2d = jax.lax.rsqrt(jnp.maximum(out_deg, 1.0))  # (G, N)
    in_norm_c = in_norm_2d[:, :, None]             # (G, N, 1) destination scaling
    out_norm_c = out_norm_2d[:, :, None]           # (G, N, 1) source scaling

    # ---- GraphConv 1 (in_dim = 1, features = in-degrees) + ReLU
    # Aggregation of a scalar feature: masked VPU multiply + lane reduction.
    x1_row = (in_deg * out_norm_2d)[:, None, :]    # (G, 1, N) scaled source features
    agg1 = jnp.sum(A * x1_row, axis=2, keepdims=True)        # (G, N, 1)
    y1 = agg1 * in_norm_c                          # (G, N, 1)
    # Rank-1 "matmul" (N,1)@(1,H) as a VPU broadcast outer product.
    w1 = w1_ref[...].reshape(1, 1, H)
    b1 = b1_ref[...].reshape(1, 1, H)
    h1 = jnp.maximum(y1 * w1 + b1, 0.0)            # (G, N, H)

    # ---- GraphConv 2 + ReLU
    x2 = h1 * out_norm_c                                          # (G, N, H)
    agg2 = jnp.einsum('gij,gjf->gif', A, x2,
                      preferred_element_type=jnp.float32)         # (G, N, H)
    y2 = (agg2 * in_norm_c).reshape(G * N, H)                     # (G*N, H) full-width M
    z2 = jnp.dot(y2, w2_ref[...],
                 preferred_element_type=jnp.float32) + b2_ref[...]
    h2 = jnp.maximum(z2, 0.0).reshape(G, N, H)                    # (G, N, H)

    # ---- readout (mean over nodes fused as sum * (1/N)) + classifier
    # TODO(synk): if the dense adjacency ever pads variable-sized graphs, pass
    # per-graph node counts and divide by those instead of the fixed dense N.
    hsum = jnp.sum(h2, axis=1)                                    # (G, H)
    logits = (jnp.dot(hsum, wc_ref[...],
                      preferred_element_type=jnp.float32) * (1.0 / N)
              + bc_ref[...])                                      # (G, C)
    out_ref[...] = logits


def classifier_forward(adj, w1, b1, w2, b2, wc, bc, graphs_per_step=None):
    B, N, _ = adj.shape
    H = w2.shape[0]
    C = wc.shape[1]

    # Pack ~128 nodes' worth of graphs per grid step.
    if graphs_per_step is None:
        graphs_per_step = max(1, 128 // N)
    G = graphs_per_step
    Bp = ((B + G - 1) // G) * G
    if Bp != B:
        adj = jnp.concatenate(
            [adj, jnp.zeros((Bp - B, N, N), adj.dtype)], axis=0)

    # Stream the adjacency in bf16 (0/1 values are exact); compute stays f32.
    adj_bf16 = adj.astype(jnp.bfloat16)

    out = pl.pallas_call(
        gcn_classifier_kernel,
        out_shape=jax.ShapeDtypeStruct((Bp, C), jnp.float32),
        grid_spec=pltpu.PrefetchScalarGridSpec(
            num_scalar_prefetch=0,
            grid=(Bp // G,),
            in_specs=[
                pl.BlockSpec((G, N, N), lambda b: (b, 0, 0)),  # adjacency slab
                pl.BlockSpec((1, H), lambda b: (0, 0)),        # W1 (in_dim=1, H)
                pl.BlockSpec((1, H), lambda b: (0, 0)),        # b1
                pl.BlockSpec((H, H), lambda b: (0, 0)),        # W2
                pl.BlockSpec((1, H), lambda b: (0, 0)),        # b2
                pl.BlockSpec((H, C), lambda b: (0, 0)),        # W_classify
                pl.BlockSpec((1, C), lambda b: (0, 0)),        # b_classify
            ],
            out_specs=pl.BlockSpec((G, C), lambda b: (b, 0)),
        ),
        compiler_params=pltpu.CompilerParams(
            dimension_semantics=("parallel",)),
    )(adj_bf16, w1, b1, w2, b2, wc, bc)
    return out[:B]


def reference_forward(adj, w1, b1, w2, b2, wc, bc):
    """Pure-JAX reference of the same math (for correctness check)."""
    in_deg = jnp.sum(adj, axis=2, keepdims=True)             # (B, N, 1)
    out_deg = jnp.sum(adj, axis=1)[:, :, None]               # (B, N, 1)
    in_norm = 1.0 / jnp.sqrt(jnp.maximum(in_deg, 1.0))
    out_norm = 1.0 / jnp.sqrt(jnp.maximum(out_deg, 1.0))

    def layer(h, W, b):
        x = h * out_norm
        agg = jnp.einsum('bij,bjf->bif', adj, x)
        y = agg * in_norm
        return jax.nn.relu(y @ W + b)

    h = in_deg
    h = layer(h, w1, b1)
    h = layer(h, w2, b2)
    hg = jnp.mean(h, axis=1)                                  # (B, H)
    return hg @ wc + bc


if __name__ == "__main__":
    # Small, module-consistent shapes: in_dim=1 (degree features), hidden=32, 4 classes.
    # B=20 exercises both multi-graph packing (G = 128//16 = 8) and batch padding.
    B, N, H, C = 20, 16, 32, 4

    key = jax.random.PRNGKey(0)
    k_adj, k_w1, k_b1, k_w2, k_b2, k_wc, k_bc = jax.random.split(key, 7)

    # Dense adjacency (directed, 0/1); adj[b, i, j] = 1 means edge j -> i.
    adj = jax.random.bernoulli(k_adj, 0.4, (B, N, N)).astype(jnp.float32)

    # Deterministic synthetic parameters (GraphConv weights/biases, Linear weight/bias).
    w1 = 0.1 * jax.random.normal(k_w1, (1, H), jnp.float32)
    b1 = 0.1 * jax.random.normal(k_b1, (1, H), jnp.float32)
    w2 = 0.1 * jax.random.normal(k_w2, (H, H), jnp.float32)
    b2 = 0.1 * jax.random.normal(k_b2, (1, H), jnp.float32)
    wc = 0.1 * jax.random.normal(k_wc, (H, C), jnp.float32)
    bc = 0.1 * jax.random.normal(k_bc, (1, C), jnp.float32)

    logits = classifier_forward(adj, w1, b1, w2, b2, wc, bc)
    logits = jax.block_until_ready(logits)

    ref = reference_forward(adj, w1, b1, w2, b2, wc, bc)
    assert logits.shape == (B, C)
    assert jnp.allclose(logits, ref, atol=1e-4, rtol=1e-3), (logits, ref)

    print("KERNEL_OK")
</pallas_src>

<mosaic_0001>
module attributes {stable_mosaic.version = 11 : i64} {
  func.func @gcn_classifier_kernel(%arg0: i32, %arg1: memref<8x16x16xbf16, #tpu.memory_space<vmem>>, %arg2: memref<1x32xf32, #tpu.memory_space<vmem>>, %arg3: memref<1x32xf32, #tpu.memory_space<vmem>>, %arg4: memref<32x32xf32, #tpu.memory_space<vmem>>, %arg5: memref<1x32xf32, #tpu.memory_space<vmem>>, %arg6: memref<32x4xf32, #tpu.memory_space<vmem>>, %arg7: memref<1x4xf32, #tpu.memory_space<vmem>>, %arg8: memref<8x4xf32, #tpu.memory_space<vmem>>) attributes {dimension_semantics = [#tpu.dimension_semantics<parallel>], iteration_bounds = array<i64: 3>, scalar_prefetch = 0 : i64, scratch_operands = 0 : i64, tpu.core_type = #tpu.core_type<tc>, window_params = [{transform_indices = @transform_0, window_bounds = array<i64: 8, 16, 16>}, {pipeline_mode = #tpu.pipeline_mode<synchronous>, transform_indices = @transform_1, window_bounds = array<i64: 1, 32>}, {pipeline_mode = #tpu.pipeline_mode<synchronous>, transform_indices = @transform_2, window_bounds = array<i64: 1, 32>}, {pipeline_mode = #tpu.pipeline_mode<synchronous>, transform_indices = @transform_3, window_bounds = array<i64: 32, 32>}, {pipeline_mode = #tpu.pipeline_mode<synchronous>, transform_indices = @transform_4, window_bounds = array<i64: 1, 32>}, {pipeline_mode = #tpu.pipeline_mode<synchronous>, transform_indices = @transform_5, window_bounds = array<i64: 32, 4>}, {pipeline_mode = #tpu.pipeline_mode<synchronous>, transform_indices = @transform_6, window_bounds = array<i64: 1, 4>}, {transform_indices = @transform_7, window_bounds = array<i64: 8, 4>}]} {
    %c0 = arith.constant 0 : index
    %c0_0 = arith.constant 0 : index
    %c0_1 = arith.constant 0 : index
    %0 = vector.load %arg1[%c0, %c0_0, %c0_1] : memref<8x16x16xbf16, #tpu.memory_space<vmem>>, vector<8x16x16xbf16>
    %1 = arith.extf %0 : vector<8x16x16xbf16> to vector<8x16x16xf32>
    %cst = arith.constant dense<0.000000e+00> : vector<8x16xf32>
    %2 = vector.multi_reduction <add>, %1, %cst [2] : vector<8x16x16xf32> to vector<8x16xf32>
    %cst_2 = arith.constant dense<0.000000e+00> : vector<8x16xf32>
    %3 = vector.multi_reduction <add>, %1, %cst_2 [1] : vector<8x16x16xf32> to vector<8x16xf32>
    %cst_3 = arith.constant 1.000000e+00 : f32
    %4 = vector.broadcast %cst_3 : f32 to vector<8x16xf32>
    %5 = arith.maximumf %2, %4 : vector<8x16xf32>
    %6 = math.rsqrt %5 : vector<8x16xf32>
    %cst_4 = arith.constant 1.000000e+00 : f32
    %7 = vector.broadcast %cst_4 : f32 to vector<8x16xf32>
    %8 = arith.maximumf %3, %7 : vector<8x16xf32>
    %9 = math.rsqrt %8 : vector<8x16xf32>
    %10 = vector.shape_cast %6 : vector<8x16xf32> to vector<8x16x1xf32>
    %11 = vector.shape_cast %9 : vector<8x16xf32> to vector<8x16x1xf32>
    %12 = arith.mulf %2, %9 : vector<8x16xf32>
    %13 = vector.shape_cast %12 : vector<8x16xf32> to vector<8x1x16xf32>
    %14 = vector.broadcast %13 : vector<8x1x16xf32> to vector<8x16x16xf32>
    %15 = arith.mulf %1, %14 : vector<8x16x16xf32>
    %cst_5 = arith.constant dense<0.000000e+00> : vector<8x16xf32>
    %16 = vector.multi_reduction <add>, %15, %cst_5 [2] : vector<8x16x16xf32> to vector<8x16xf32>
    %17 = vector.shape_cast %16 : vector<8x16xf32> to vector<8x16x1xf32>
    %18 = arith.mulf %17, %10 : vector<8x16x1xf32>
    %c0_6 = arith.constant 0 : index
    %c0_7 = arith.constant 0 : index
    %19 = vector.load %arg2[%c0_6, %c0_7] : memref<1x32xf32, #tpu.memory_space<vmem>>, vector<1x32xf32>
    %20 = vector.shape_cast %19 : vector<1x32xf32> to vector<1x1x32xf32>
    %c0_8 = arith.constant 0 : index
    %c0_9 = arith.constant 0 : index
    %21 = vector.load %arg3[%c0_8, %c0_9] : memref<1x32xf32, #tpu.memory_space<vmem>>, vector<1x32xf32>
    %22 = vector.shape_cast %21 : vector<1x32xf32> to vector<1x1x32xf32>
    %23 = vector.broadcast %18 : vector<8x16x1xf32> to vector<8x16x32xf32>
    %24 = vector.broadcast %20 : vector<1x1x32xf32> to vector<8x16x32xf32>
    %25 = arith.mulf %23, %24 : vector<8x16x32xf32>
    %26 = vector.broadcast %22 : vector<1x1x32xf32> to vector<8x16x32xf32>
    %27 = arith.addf %25, %26 : vector<8x16x32xf32>
    %cst_10 = arith.constant 0.000000e+00 : f32
    %28 = vector.broadcast %cst_10 : f32 to vector<8x16x32xf32>
    %29 = arith.maximumf %27, %28 : vector<8x16x32xf32>
    %30 = vector.broadcast %11 : vector<8x16x1xf32> to vector<8x16x32xf32>
    %31 = arith.mulf %29, %30 : vector<8x16x32xf32>
    "tpu.trace_start"() <{level = 10 : i32, message = "gij,gjf->gif"}> : () -> ()
    %cst_11 = arith.constant dense<0.000000e+00> : vector<8x16x32xf32>
    %32 = tpu.matmul %1, %31, %cst_11 {dimension_numbers = #tpu.dot_dimension_numbers<[2], [1], [1], [2], [0, 0, 0, 1, 1, 2], [0], [0]>} : vector<8x16x16xf32>, vector<8x16x32xf32>, vector<8x16x32xf32> -> vector<8x16x32xf32>
    "tpu.trace_stop"() : () -> ()
    %33 = vector.broadcast %10 : vector<8x16x1xf32> to vector<8x16x32xf32>
    %34 = arith.mulf %32, %33 : vector<8x16x32xf32>
    %35 = vector.shape_cast %34 : vector<8x16x32xf32> to vector<128x32xf32>
    %c0_12 = arith.constant 0 : index
    %c0_13 = arith.constant 0 : index
    %36 = vector.load %arg4[%c0_12, %c0_13] : memref<32x32xf32, #tpu.memory_space<vmem>>, vector<32x32xf32>
    %cst_14 = arith.constant dense<0.000000e+00> : vector<128x32xf32>
    %37 = tpu.matmul %35, %36, %cst_14 {dimension_numbers = #tpu.dot_dimension_numbers<[1], [0], [0], [1], [0, 0, 1, 1], [], []>} : vector<128x32xf32>, vector<32x32xf32>, vector<128x32xf32> -> vector<128x32xf32>
    %c0_15 = arith.constant 0 : index
    %c0_16 = arith.constant 0 : index
    %38 = vector.load %arg5[%c0_15, %c0_16] : memref<1x32xf32, #tpu.memory_space<vmem>>, vector<1x32xf32>
    %39 = vector.broadcast %38 : vector<1x32xf32> to vector<128x32xf32>
    %40 = arith.addf %37, %39 : vector<128x32xf32>
    %cst_17 = arith.constant 0.000000e+00 : f32
    %41 = vector.broadcast %cst_17 : f32 to vector<128x32xf32>
    %42 = arith.maximumf %40, %41 : vector<128x32xf32>
    %43 = vector.shape_cast %42 : vector<128x32xf32> to vector<8x16x32xf32>
    %cst_18 = arith.constant dense<0.000000e+00> : vector<8x32xf32>
    %44 = vector.multi_reduction <add>, %43, %cst_18 [1] : vector<8x16x32xf32> to vector<8x32xf32>
    %c0_19 = arith.constant 0 : index
    %c0_20 = arith.constant 0 : index
    %45 = vector.load %arg6[%c0_19, %c0_20] : memref<32x4xf32, #tpu.memory_space<vmem>>, vector<32x4xf32>
    %cst_21 = arith.constant dense<0.000000e+00> : vector<8x4xf32>
    %46 = tpu.matmul %44, %45, %cst_21 {dimension_numbers = #tpu.dot_dimension_numbers<[1], [0], [0], [1], [0, 0, 1, 1], [], []>} : vector<8x32xf32>, vector<32x4xf32>, vector<8x4xf32> -> vector<8x4xf32>
    %cst_22 = arith.constant 6.250000e-02 : f32
    %47 = vector.broadcast %cst_22 : f32 to vector<8x4xf32>
    %48 = arith.mulf %46, %47 : vector<8x4xf32>
    %c0_23 = arith.constant 0 : index
    %c0_24 = arith.constant 0 : index
    %49 = vector.load %arg7[%c0_23, %c0_24] : memref<1x4xf32, #tpu.memory_space<vmem>>, vector<1x4xf32>
    %50 = vector.broadcast %49 : vector<1x4xf32> to vector<8x4xf32>
    %51 = arith.addf %48, %50 : vector<8x4xf32>
    %c0_25 = arith.constant 0 : index
    %c0_26 = arith.constant 0 : index
    %52 = vector.load %arg8[%c0_25, %c0_26] : memref<8x4xf32, #tpu.memory_space<vmem>>, vector<8x4xf32>
    tpu.vector_store %arg8[%c0_25, %c0_26], %51 {strides = array<i32>} : memref<8x4xf32, #tpu.memory_space<vmem>>, vector<8x4xf32>,
    return
  }
  func.func @transform_0(%arg0: i32) -> (i32, i32, i32) {
    %c0_i32 = arith.constant 0 : i32
    %c0_i32_0 = arith.constant 0 : i32
    %c0_i32_1 = arith.constant 0 : i32
    return %arg0, %c0_i32, %c0_i32_0 : i32, i32, i32
  }
  func.func @transform_1(%arg0: i32) -> (i32, i32) {
    %c0_i32 = arith.constant 0 : i32
    %c0_i32_0 = arith.constant 0 : i32
    %c0_i32_1 = arith.constant 0 : i32
    return %c0_i32, %c0_i32_0 : i32, i32
  }
  func.func @transform_2(%arg0: i32) -> (i32, i32) {
    %c0_i32 = arith.constant 0 : i32
    %c0_i32_0 = arith.constant 0 : i32
    %c0_i32_1 = arith.constant 0 : i32
    return %c0_i32, %c0_i32_0 : i32, i32
  }
  func.func @transform_3(%arg0: i32) -> (i32, i32) {
    %c0_i32 = arith.constant 0 : i32
    %c0_i32_0 = arith.constant 0 : i32
    %c0_i32_1 = arith.constant 0 : i32
    return %c0_i32, %c0_i32_0 : i32, i32
  }
  func.func @transform_4(%arg0: i32) -> (i32, i32) {
    %c0_i32 = arith.constant 0 : i32
    %c0_i32_0 = arith.constant 0 : i32
    %c0_i32_1 = arith.constant 0 : i32
    return %c0_i32, %c0_i32_0 : i32, i32
  }
  func.func @transform_5(%arg0: i32) -> (i32, i32) {
    %c0_i32 = arith.constant 0 : i32
    %c0_i32_0 = arith.constant 0 : i32
    %c0_i32_1 = arith.constant 0 : i32
    return %c0_i32, %c0_i32_0 : i32, i32
  }
  func.func @transform_6(%arg0: i32) -> (i32, i32) {
    %c0_i32 = arith.constant 0 : i32
    %c0_i32_0 = arith.constant 0 : i32
    %c0_i32_1 = arith.constant 0 : i32
    return %c0_i32, %c0_i32_0 : i32, i32
  }
  func.func @transform_7(%arg0: i32) -> (i32, i32) {
    %c0_i32 = arith.constant 0 : i32
    %c0_i32_0 = arith.constant 0 : i32
    return %arg0, %c0_i32 : i32, i32
  }
}

</mosaic_0001>

<llo_original>
// kernel: tpu_custom_call.1
$region0: #{tpu_custom_call.1}
  #allocation0 [shape = 'u32[]', space=smem, size = 0x4, offset = 0x4, fixed_abs, tag = 'smem constant byte address 0x4 - core index']
  #allocation1 [shape = 'u32[144,128]{1,0:T(1,128)}', space=vmem, size = 0x12000, scoped, tag = 'internal scratch']
  %s0 = inlined_call_operand.vmem [shape: bf16[24,16,16], index: 0, kind: input, shape index: {}]
  %s1 = inlined_call_operand.vmem [shape: f32[1,32], index: 1, kind: input, shape index: {}]
  %s2 = inlined_call_operand.vmem [shape: f32[1,32], index: 2, kind: input, shape index: {}]
  %s3 = inlined_call_operand.vmem [shape: f32[32,32], index: 3, kind: input, shape index: {}]
  %s4 = inlined_call_operand.vmem [shape: f32[1,32], index: 4, kind: input, shape index: {}]
  %s5 = inlined_call_operand.vmem [shape: f32[32,4], index: 5, kind: input, shape index: {}]
  %s6 = inlined_call_operand.vmem [shape: f32[1,4], index: 6, kind: input, shape index: {}]
  %s7 = inlined_call_operand.vmem [shape: f32[24,4], index: 7, kind: output, shape index: {}]
  %s8 = sld [smem:[#allocation0]]
  $region61: #{tpu_custom_call.1} parent=0
    _
  %s10 = ssub.s32 1, %s8
  %s11 = scalar_select 0, %s10, %s8
  loop: start=0, step=1, limit=5
  $region2: #{tpu_custom_call.1} parent=0 // loop_pre_header
    _
  $region3: #{tpu_custom_call.1} parent=0 // loop_header
    %s13 = sphi 0, %s17
    %p14 = scmp.ge.s32.totalorder %s13, 5
    %s23 = sphi 0, %s25
    %s26 = sphi 0, %s23
    %s27 = sphi 0, %s26
    %s43 = sphi 0, %s27
    %s47 = sphi 0, %s47
    %s49 = sphi 0, %s47
    %s50 = sphi 0, %s49
    %s64 = sphi 0, %s50
    %s68 = sphi 0, %s68
    %s70 = sphi 0, %s68
    %s71 = sphi 0, %s70
    %s85 = sphi 0, %s71
    %s89 = sphi 0, %s89
    %s91 = sphi 0, %s89
    %s92 = sphi 0, %s91
    %s106 = sphi 0, %s92
    %s110 = sphi 0, %s110
    %s112 = sphi 0, %s110
    %s113 = sphi 0, %s112
    %s127 = sphi 0, %s113
    %s131 = sphi 0, %s131
    %s133 = sphi 0, %s131
    %s134 = sphi 0, %s133
    %s148 = sphi 0, %s134
    %s152 = sphi 0, %s152
    %s154 = sphi 0, %s152
    %s155 = sphi 0, %s154
    %s169 = sphi 0, %s155
    %s175 = sphi 0, %s177
    %s178 = sphi 0, %s175
    %s179 = sphi 0, %s178
    %s195 = sphi 0, %s179
  $region4: #{tpu_custom_call.1} parent=0 // loop_header_branch
    %16 = sbr.rel (%p14) target = $region8
  $region5: #{tpu_custom_call.1} parent=0 // loop_body
    %s18 = ssub.s32 %s13, 1
    %s19 = ssub.s32 %s13, 2
    %s20 = sadd.s32 %s13, 1
    %s21 = ssub.s32 %s13, %s20
    %p22 = scmp.eq.s32.totalorder %s21, 0
    %s24 = sadd.s32 %s23, 1
    %s25 = scalar_select %p22, %s23, %s24
    %p28 = pneg %p22
    %p29 = scmp.eq.s32.totalorder %s13, 2
    %p30 = por %p28, %p29
    %p31 = scmp.ne.s32.totalorder %s23, %s26
    %p32 = scmp.eq.s32.totalorder %s13, 0
    %p33 = por %p31, %p32
    %p34 = scmp.ne.s32.totalorder %s23, %s26
    %p35 = scmp.eq.s32.totalorder %s18, 2
    %p36 = por %p34, %p35
    %p37 = scmp.ne.s32.totalorder %s26, %s27
    %p38 = scmp.eq.s32.totalorder %s18, 0
    %p39 = por %p37, %p38
    %p40 = scmp.ne.s32.totalorder %s26, %s27
    %p41 = scmp.eq.s32.totalorder %s19, 2
    %p42 = por %p40, %p41
    %p44 = scmp.ne.s32.totalorder %s27, %s43
    %p45 = scmp.eq.s32.totalorder %s19, 0
    %p46 = por %p44, %p45
    %s48 = sadd.s32 %s47, 1
    %p51 = scmp.eq.s32.totalorder %s13, 2
    %p52 = scmp.ne.s32.totalorder %s47, %s49
    %p53 = scmp.eq.s32.totalorder %s13, 0
    %p54 = por %p52, %p53
    %p55 = scmp.ne.s32.totalorder %s47, %s49
    %p56 = scmp.eq.s32.totalorder %s18, 2
    %p57 = por %p55, %p56
    %p58 = scmp.ne.s32.totalorder %s49, %s50
    %p59 = scmp.eq.s32.totalorder %s18, 0
    %p60 = por %p58, %p59
    %p61 = scmp.ne.s32.totalorder %s49, %s50
    %p62 = scmp.eq.s32.totalorder %s19, 2
    %p63 = por %p61, %p62
    %p65 = scmp.ne.s32.totalorder %s50, %s64
    %p66 = scmp.eq.s32.totalorder %s19, 0
    %p67 = por %p65, %p66
    %s69 = sadd.s32 %s68, 1
    %p72 = scmp.eq.s32.totalorder %s13, 2
    %p73 = scmp.ne.s32.totalorder %s68, %s70
    %p74 = scmp.eq.s32.totalorder %s13, 0
    %p75 = por %p73, %p74
    %p76 = scmp.ne.s32.totalorder %s68, %s70
    %p77 = scmp.eq.s32.totalorder %s18, 2
    %p78 = por %p76, %p77
    %p79 = scmp.ne.s32.totalorder %s70, %s71
    %p80 = scmp.eq.s32.totalorder %s18, 0
    %p81 = por %p79, %p80
    %p82 = scmp.ne.s32.totalorder %s70, %s71
    %p83 = scmp.eq.s32.totalorder %s19, 2
    %p84 = por %p82, %p83
    %p86 = scmp.ne.s32.totalorder %s71, %s85
    %p87 = scmp.eq.s32.totalorder %s19, 0
    %p88 = por %p86, %p87
    %s90 = sadd.s32 %s89, 1
    %p93 = scmp.eq.s32.totalorder %s13, 2
    %p94 = scmp.ne.s32.totalorder %s89, %s91
    %p95 = scmp.eq.s32.totalorder %s13, 0
    %p96 = por %p94, %p95
    %p97 = scmp.ne.s32.totalorder %s89, %s91
    %p98 = scmp.eq.s32.totalorder %s18, 2
    %p99 = por %p97, %p98
    %p100 = scmp.ne.s32.totalorder %s91, %s92
    %p101 = scmp.eq.s32.totalorder %s18, 0
    %p102 = por %p100, %p101
    %p103 = scmp.ne.s32.totalorder %s91, %s92
    %p104 = scmp.eq.s32.totalorder %s19, 2
    %p105 = por %p103, %p104
    %p107 = scmp.ne.s32.totalorder %s92, %s106
    %p108 = scmp.eq.s32.totalorder %s19, 0
    %p109 = por %p107, %p108
    %s111 = sadd.s32 %s110, 1
    %p114 = scmp.eq.s32.totalorder %s13, 2
    %p115 = scmp.ne.s32.totalorder %s110, %s112
    %p116 = scmp.eq.s32.totalorder %s13, 0
    %p117 = por %p115, %p116
    %p118 = scmp.ne.s32.totalorder %s110, %s112
    %p119 = scmp.eq.s32.totalorder %s18, 2
    %p120 = por %p118, %p119
    %p121 = scmp.ne.s32.totalorder %s112, %s113
    %p122 = scmp.eq.s32.totalorder %s18, 0
    %p123 = por %p121, %p122
    %p124 = scmp.ne.s32.totalorder %s112, %s113
    %p125 = scmp.eq.s32.totalorder %s19, 2
    %p126 = por %p124, %p125
    %p128 = scmp.ne.s32.totalorder %s113, %s127
    %p129 = scmp.eq.s32.totalorder %s19, 0
    %p130 = por %p128, %p129
    %s132 = sadd.s32 %s131, 1
    %p135 = scmp.eq.s32.totalorder %s13, 2
    %p136 = scmp.ne.s32.totalorder %s131, %s133
    %p137 = scmp.eq.s32.totalorder %s13, 0
    %p138 = por %p136, %p137
    %p139 = scmp.ne.s32.totalorder %s131, %s133
    %p140 = scmp.eq.s32.totalorder %s18, 2
    %p141 = por %p139, %p140
    %p142 = scmp.ne.s32.totalorder %s133, %s134
    %p143 = scmp.eq.s32.totalorder %s18, 0
    %p144 = por %p142, %p143
    %p145 = scmp.ne.s32.totalorder %s133, %s134
    %p146 = scmp.eq.s32.totalorder %s19, 2
    %p147 = por %p145, %p146
    %p149 = scmp.ne.s32.totalorder %s134, %s148
    %p150 = scmp.eq.s32.totalorder %s19, 0
    %p151 = por %p149, %p150
    %s153 = sadd.s32 %s152, 1
    %p156 = scmp.eq.s32.totalorder %s13, 2
    %p157 = scmp.ne.s32.totalorder %s152, %s154
    %p158 = scmp.eq.s32.totalorder %s13, 0
    %p159 = por %p157, %p158
    %p160 = scmp.ne.s32.totalorder %s152, %s154
    %p161 = scmp.eq.s32.totalorder %s18, 2
    %p162 = por %p160, %p161
    %p163 = scmp.ne.s32.totalorder %s154, %s155
    %p164 = scmp.eq.s32.totalorder %s18, 0
    %p165 = por %p163, %p164
    %p166 = scmp.ne.s32.totalorder %s154, %s155
    %p167 = scmp.eq.s32.totalorder %s19, 2
    %p168 = por %p166, %p167
    %p170 = scmp.ne.s32.totalorder %s155, %s169
    %p171 = scmp.eq.s32.totalorder %s19, 0
    %p172 = por %p170, %p171
    %s173 = ssub.s32 %s13, %s20
    %p174 = scmp.eq.s32.totalorder %s173, 0
    %s176 = sadd.s32 %s175, 1
    %s177 = scalar_select %p174, %s175, %s176
    %p180 = pneg %p174
    %p181 = scmp.eq.s32.totalorder %s13, 2
    %p182 = por %p180, %p181
    %p183 = scmp.ne.s32.totalorder %s175, %s178
    %p184 = scmp.eq.s32.totalorder %s13, 0
    %p185 = por %p183, %p184
    %p186 = scmp.ne.s32.totalorder %s175, %s178
    %p187 = scmp.eq.s32.totalorder %s18, 2
    %p188 = por %p186, %p187
    %p189 = scmp.ne.s32.totalorder %s178, %s179
    %p190 = scmp.eq.s32.totalorder %s18, 0
    %p191 = por %p189, %p190
    %p192 = scmp.ne.s32.totalorder %s178, %s179
    %p193 = scmp.eq.s32.totalorder %s19, 2
    %p194 = por %p192, %p193
    %p196 = scmp.ne.s32.totalorder %s179, %s195
    %p197 = scmp.eq.s32.totalorder %s19, 0
    %p198 = por %p196, %p197
    %p199 = scmp.le.s32.totalorder 1, %s13
    %p200 = scmp.lt.s32.totalorder %s13, 4
    %p201 = pnand %p199, %p200
    %p202 = pneg %p201
    // Predicated region
    $region9: #{tpu_custom_call.1} parent=5 // pred_check
      _
    $region10: #{tpu_custom_call.1} parent=5 // pred_check_branch
      %204 = sbr.rel (%p201) target = $region12
    $region11: #{tpu_custom_call.1} parent=5 // pred_region
      %s205 = ssub.s32 %s13, 1
      // Predicated region
      $region13: #{tpu_custom_call.1} parent=11 // pred_check
        %p206 = pneg %p60
      $region14: #{tpu_custom_call.1} parent=11 // pred_check_branch
        %208 = sbr.rel (%p206) target = $region16
      $region15: #{tpu_custom_call.1} parent=11 // pred_region
        _
      $region16: #{tpu_custom_call.1} parent=11 // pred_fallthru
        _
      // Predicated region
      $region17: #{tpu_custom_call.1} parent=11 // pred_check
        %p209 = pneg %p81
      $region18: #{tpu_custom_call.1} parent=11 // pred_check_branch
        %211 = sbr.rel (%p209) target = $region20
      $region19: #{tpu_custom_call.1} parent=11 // pred_region
        _
      $region20: #{tpu_custom_call.1} parent=11 // pred_fallthru
        _
      // Predicated region
      $region21: #{tpu_custom_call.1} parent=11 // pred_check
        %p212 = pneg %p102
      $region22: #{tpu_custom_call.1} parent=11 // pred_check_branch
        %214 = sbr.rel (%p212) target = $region24
      $region23: #{tpu_custom_call.1} parent=11 // pred_region
        _
      $region24: #{tpu_custom_call.1} parent=11 // pred_fallthru
        _
      // Predicated region
      $region25: #{tpu_custom_call.1} parent=11 // pred_check
        %p215 = pneg %p123
      $region26: #{tpu_custom_call.1} parent=11 // pred_check_branch
        %217 = sbr.rel (%p215) target = $region28
      $region27: #{tpu_custom_call.1} parent=11 // pred_region
        _
      $region28: #{tpu_custom_call.1} parent=11 // pred_fallthru
        _
      // Predicated region
      $region29: #{tpu_custom_call.1} parent=11 // pred_check
        %p218 = pneg %p144
      $region30: #{tpu_custom_call.1} parent=11 // pred_check_branch
        %220 = sbr.rel (%p218) target = $region32
      $region31: #{tpu_custom_call.1} parent=11 // pred_region
        _
      $region32: #{tpu_custom_call.1} parent=11 // pred_fallthru
        _
      // Predicated region
      $region33: #{tpu_custom_call.1} parent=11 // pred_check
        %p221 = pneg %p165
      $region34: #{tpu_custom_call.1} parent=11 // pred_check_branch
        %223 = sbr.rel (%p221) target = $region36
      $region35: #{tpu_custom_call.1} parent=11 // pred_region
        _
      $region36: #{tpu_custom_call.1} parent=11 // pred_fallthru
        _
    $region12: #{tpu_custom_call.1} parent=5 // pred_fallthru
      _
    %p224 = scmp.lt.s32.totalorder %s13, 3
    // Predicated region
    $region37: #{tpu_custom_call.1} parent=5 // pred_check
      %p225 = pneg %p224
    $region38: #{tpu_custom_call.1} parent=5 // pred_check_branch
      %227 = sbr.rel (%p225) target = $region40
    $region39: #{tpu_custom_call.1} parent=5 // pred_region
      // Predicated region
      $region41: #{tpu_custom_call.1} parent=39 // pred_check
        %p228 = pneg %p33
      $region42: #{tpu_custom_call.1} parent=39 // pred_check_branch
        %230 = sbr.rel (%p228) target = $region44
      $region43: #{tpu_custom_call.1} parent=39 // pred_region
        %s231 = smul.u32 8, %s13
        %p232 = scmp.lt.s32.totalorder %s231, 23
        %s233 = scalar_select %p232, %s231, 23
        %s234 = smul.addr %s233, 2
        %s235 = smul.addr %s234, 4
        %s236 = scalar_lea.vmem %s0, %s235
        %s237 = smul.u32 8, %s13
      $region44: #{tpu_custom_call.1} parent=39 // pred_fallthru
        _
    $region40: #{tpu_custom_call.1} parent=5 // pred_fallthru
      _
    %p238 = scmp.le.s32.totalorder 1, %s13
    %p239 = scmp.lt.s32.totalorder %s13, 4
    %p240 = pnand %p238, %p239
    %p241 = pneg %p240
    // Predicated region
    $region45: #{tpu_custom_call.1} parent=5 // pred_check
      _
    $region46: #{tpu_custom_call.1} parent=5 // pred_check_branch
      %243 = sbr.rel (%p240) target = $region48
    $region47: #{tpu_custom_call.1} parent=5 // pred_region
      %s244 = ssub.s32 %s13, 1
      %s245 = smul.u32 8, %s18
      %p246 = scmp.lt.s32.totalorder %s245, 23
      %s247 = scalar_select %p246, %s245, 23
      %s248 = smul.addr %s247, 2
      %s249 = smul.addr %s248, 4
      %s250 = scalar_lea.vmem %s0, %s249
      %p251 = pneg %p39
      %p252 = pneg %p36
      %p253 = pneg %p60
      %p254 = pneg %p57
      %p255 = pneg %p81
      %p256 = pneg %p78
      %p257 = pneg %p102
      %p258 = pneg %p99
      %p259 = pneg %p123
      %p260 = pneg %p120
      %p261 = pneg %p144
      %p262 = pneg %p141
      %p263 = pneg %p165
      %p264 = pneg %p162
      %p265 = pneg %p191
      %p266 = pneg %p188
      %p267 = scmp.lt.s32.totalorder %s18, 2
      %s268 = scalar_select %p267, %s18, 2
      %s269 = smul.addr %s268, 8
      %s270 = scalar_lea.vmem %s7, %s269
      %s271 = smul.u32 8, %s18
      %p272 = scmp.lt.s32.totalorder %s271, 23
      %s273 = scalar_select %p272, %s271, 23
      %s274 = smul.addr %s273, 2
      %s275 = smul.addr %s274, 4
      %s276 = scalar_lea.vmem %s0, %s275
      %s277 = smul.u32 8, %s18
      %p278 = scmp.lt.s32.totalorder %s18, 2
      %s279 = scalar_select %p278, %s18, 2
      %s280 = smul.addr %s279, 8
      %s281 = scalar_lea.vmem %s7, %s280
      %v282 = vld [vmem:[%s276] sm:$0xf]
      %v283 = vld [vmem:[%s276 + $0x4] sm:$0xf]
      %v284 = vld [vmem:[%s276 + $0x8] sm:$0xf]
      %v285 = vld [vmem:[%s276 + $0xc] sm:$0xf]
      %v286 = vld [vmem:[%s276 + $0x10] sm:$0xf]
      %v287 = vld [vmem:[%s276 + $0x14] sm:$0xf]
      %v288 = vld [vmem:[%s276 + $0x18] sm:$0xf]
      %v289 = vld [vmem:[%s276 + $0x1c] sm:$0xf]
      %v290 = vld [vmem:[%s276 + $0x20] sm:$0xf]
      %v291 = vld [vmem:[%s276 + $0x24] sm:$0xf]
      %v292 = vld [vmem:[%s276 + $0x28] sm:$0xf]
      %v293 = vld [vmem:[%s276 + $0x2c] sm:$0xf]
      %v294 = vld [vmem:[%s276 + $0x30] sm:$0xf]
      %v295 = vld [vmem:[%s276 + $0x34] sm:$0xf]
      %v296 = vld [vmem:[%s276 + $0x38] sm:$0xf]
      %v297 = vld [vmem:[%s276 + $0x3c] sm:$0xf]
      %v298 = vunpack.c.l.bf16 %v282
      %v299 = vunpack.c.l.bf16 %v283
      %v300 = vunpack.c.l.bf16 %v284
      %v301 = vunpack.c.l.bf16 %v285
      %v302 = vunpack.c.l.bf16 %v286
      %v303 = vunpack.c.l.bf16 %v287
      %v304 = vunpack.c.l.bf16 %v288
      %v305 = vunpack.c.l.bf16 %v289
      %v306 = vunpack.c.l.bf16 %v290
      %v307 = vunpack.c.l.bf16 %v291
      %v308 = vunpack.c.l.bf16 %v292
      %v309 = vunpack.c.l.bf16 %v293
      %v310 = vunpack.c.l.bf16 %v294
      %v311 = vunpack.c.l.bf16 %v295
      %v312 = vunpack.c.l.bf16 %v296
      %v313 = vunpack.c.l.bf16 %v297
      %vm314 = vcmask 130048
      %v315 = vsel %vm314, %v298, 0.0
      %316 = vadd.xlane.f32.xlu0 %v315
      %v317 = vpop.xlane.xlu0 %316
      %v318 = vsel %vm314, %v299, 0.0
      %319 = vadd.xlane.f32.xlu0 %v318
      %v320 = vpop.xlane.xlu0 %319
      %v321 = vsel %vm314, %v300, 0.0
      %322 = vadd.xlane.f32.xlu0 %v321
      %v323 = vpop.xlane.xlu0 %322
      %v324 = vsel %vm314, %v301, 0.0
      %325 = vadd.xlane.f32.xlu0 %v324
      %v326 = vpop.xlane.xlu0 %325
      %v327 = vsel %vm314, %v302, 0.0
      %328 = vadd.xlane.f32.xlu0 %v327
      %v329 = vpop.xlane.xlu0 %328
      %v330 = vsel %vm314, %v303, 0.0
      %331 = vadd.xlane.f32.xlu0 %v330
      %v332 = vpop.xlane.xlu0 %331
      %v333 = vsel %vm314, %v304, 0.0
      %334 = vadd.xlane.f32.xlu0 %v333
      %v335 = vpop.xlane.xlu0 %334
      %v336 = vsel %vm314, %v305, 0.0
      %337 = vadd.xlane.f32.xlu0 %v336
      %v338 = vpop.xlane.xlu0 %337
      %v339 = vsel %vm314, %v306, 0.0
      %340 = vadd.xlane.f32.xlu0 %v339
      %v341 = vpop.xlane.xlu0 %340
      %v342 = vsel %vm314, %v307, 0.0
      %343 = vadd.xlane.f32.xlu0 %v342
      %v344 = vpop.xlane.xlu0 %343
      %v345 = vsel %vm314, %v308, 0.0
      %346 = vadd.xlane.f32.xlu0 %v345
      %v347 = vpop.xlane.xlu0 %346
      %v348 = vsel %vm314, %v309, 0.0
      %349 = vadd.xlane.f32.xlu0 %v348
      %v350 = vpop.xlane.xlu0 %349
      %v351 = vsel %vm314, %v310, 0.0
      %352 = vadd.xlane.f32.xlu0 %v351
      %v353 = vpop.xlane.xlu0 %352
      %v354 = vsel %vm314, %v311, 0.0
      %355 = vadd.xlane.f32.xlu0 %v354
      %v356 = vpop.xlane.xlu0 %355
      %v357 = vsel %vm314, %v312, 0.0
      %358 = vadd.xlane.f32.xlu0 %v357
      %v359 = vpop.xlane.xlu0 %358
      %v360 = vsel %vm314, %v313, 0.0
      %361 = vadd.xlane.f32.xlu0 %v360
      %v362 = vpop.xlane.xlu0 %361
      %v363 = vadd.f32 %v315, %v318
      %v364 = vrot.slane %v363, 4
      %v365 = vadd.f32 %v363, %v364
      %v366 = vrot.slane %v365, 2
      %v367 = vadd.f32 %v365, %v366
      %v368 = vrot.slane %v367, 1
      %v369 = vadd.f32 %v367, %v368
      %v370 = vadd.f32 %v321, %v324
      %v371 = vrot.slane %v370, 4
      %v372 = vadd.f32 %v370, %v371
      %v373 = vrot.slane %v372, 2
      %v374 = vadd.f32 %v372, %v373
      %v375 = vrot.slane %v374, 1
      %v376 = vadd.f32 %v374, %v375
      %v377 = vadd.f32 %v327, %v330
      %v378 = vrot.slane %v377, 4
      %v379 = vadd.f32 %v377, %v378
      %v380 = vrot.slane %v379, 2
      %v381 = vadd.f32 %v379, %v380
      %v382 = vrot.slane %v381, 1
      %v383 = vadd.f32 %v381, %v382
      %v384 = vadd.f32 %v333, %v336
      %v385 = vrot.slane %v384, 4
      %v386 = vadd.f32 %v384, %v385
      %v387 = vrot.slane %v386, 2
      %v388 = vadd.f32 %v386, %v387
      %v389 = vrot.slane %v388, 1
      %v390 = vadd.f32 %v388, %v389
      %v391 = vadd.f32 %v339, %v342
      %v392 = vrot.slane %v391, 4
      %v393 = vadd.f32 %v391, %v392
      %v394 = vrot.slane %v393, 2
      %v395 = vadd.f32 %v393, %v394
      %v396 = vrot.slane %v395, 1
      %v397 = vadd.f32 %v395, %v396
      %v398 = vadd.f32 %v345, %v348
      %v399 = vrot.slane %v398, 4
      %v400 = vadd.f32 %v398, %v399
      %v401 = vrot.slane %v400, 2
      %v402 = vadd.f32 %v400, %v401
      %v403 = vrot.slane %v402, 1
      %v404 = vadd.f32 %v402, %v403
      %v405 = vadd.f32 %v351, %v354
      %v406 = vrot.slane %v405, 4
      %v407 = vadd.f32 %v405, %v406
      %v408 = vrot.slane %v407, 2
      %v409 = vadd.f32 %v407, %v408
      %v410 = vrot.slane %v409, 1
      %v411 = vadd.f32 %v409, %v410
      %v412 = vadd.f32 %v357, %v360
      %v413 = vrot.slane %v412, 4
      %v414 = vadd.f32 %v412, %v413
      %v415 = vrot.slane %v414, 2
      %v416 = vadd.f32 %v414, %v415
      %v417 = vrot.slane %v416, 1
      %v418 = vadd.f32 %v416, %v417
      %v419 = vmax.f32 %v317, 1.0
      %v420 = vmax.f32 %v320, 1.0
      %v421 = vmax.f32 %v323, 1.0
      %v422 = vmax.f32 %v326, 1.0
      %v423 = vmax.f32 %v329, 1.0
      %v424 = vmax.f32 %v332, 1.0
      %v425 = vmax.f32 %v335, 1.0
      %v426 = vmax.f32 %v338, 1.0
      %v427 = vmax.f32 %v341, 1.0
      %v428 = vmax.f32 %v344, 1.0
      %v429 = vmax.f32 %v347, 1.0
      %v430 = vmax.f32 %v350, 1.0
      %v431 = vmax.f32 %v353, 1.0
      %v432 = vmax.f32 %v356, 1.0
      %v433 = vmax.f32 %v359, 1.0
      %v434 = vmax.f32 %v362, 1.0
      %v435 = vrsqrt.pop %v419
      %v436 = vrsqrt.pop %v420
      %v437 = vrsqrt.pop %v421
      %v438 = vrsqrt.pop %v422
      %v439 = vrsqrt.pop %v423
      %v440 = vrsqrt.pop %v424
      %v441 = vrsqrt.pop %v425
      %v442 = vrsqrt.pop %v426
      %v443 = vrsqrt.pop %v427
      %v444 = vrsqrt.pop %v428
      %v445 = vrsqrt.pop %v429
      %v446 = vrsqrt.pop %v430
      %v447 = vrsqrt.pop %v431
      %v448 = vrsqrt.pop %v432
      %v449 = vrsqrt.pop %v433
      %v450 = vrsqrt.pop %v434
      %v451 = vmax.f32 %v369, 1.0
      %v452 = vmax.f32 %v376, 1.0
      %v453 = vmax.f32 %v383, 1.0
      %v454 = vmax.f32 %v390, 1.0
      %v455 = vmax.f32 %v397, 1.0
      %v456 = vmax.f32 %v404, 1.0
      %v457 = vmax.f32 %v411, 1.0
      %v458 = vmax.f32 %v418, 1.0
      %v459 = vrsqrt.pop %v451
      %v460 = vrsqrt.pop %v452
      %v461 = vrsqrt.pop %v453
      %v462 = vrsqrt.pop %v454
      %v463 = vrsqrt.pop %v455
      %v464 = vrsqrt.pop %v456
      %v465 = vrsqrt.pop %v457
      %v466 = vrsqrt.pop %v458
      %468 = vbcast.lane.b32.xlu0 %v459, 256
      %v469 = vpop.permute.xlu0 %468
      %s471 = sor.u32 256, 8
      %472 = vbcast.lane.b32.xlu0 %v459, %s471
      %v473 = vpop.permute.xlu0 %472
      %475 = vbcast.lane.b32.xlu0 %v460, 256
      %v476 = vpop.permute.xlu0 %475
      %s478 = sor.u32 256, 8
      %479 = vbcast.lane.b32.xlu0 %v460, %s478
      %v480 = vpop.permute.xlu0 %479
      %482 = vbcast.lane.b32.xlu0 %v461, 256
      %v483 = vpop.permute.xlu0 %482
      %s485 = sor.u32 256, 8
      %486 = vbcast.lane.b32.xlu0 %v461, %s485
      %v487 = vpop.permute.xlu0 %486
      %489 = vbcast.lane.b32.xlu0 %v462, 256
      %v490 = vpop.permute.xlu0 %489
      %s492 = sor.u32 256, 8
      %493 = vbcast.lane.b32.xlu0 %v462, %s492
      %v494 = vpop.permute.xlu0 %493
      %496 = vbcast.lane.b32.xlu0 %v463, 256
      %v497 = vpop.permute.xlu0 %496
      %s499 = sor.u32 256, 8
      %500 = vbcast.lane.b32.xlu0 %v463, %s499
      %v501 = vpop.permute.xlu0 %500
      %503 = vbcast.lane.b32.xlu0 %v464, 256
      %v504 = vpop.permute.xlu0 %503
      %s506 = sor.u32 256, 8
      %507 = vbcast.lane.b32.xlu0 %v464, %s506
      %v508 = vpop.permute.xlu0 %507
      %510 = vbcast.lane.b32.xlu0 %v465, 256
      %v511 = vpop.permute.xlu0 %510
      %s513 = sor.u32 256, 8
      %514 = vbcast.lane.b32.xlu0 %v465, %s513
      %v515 = vpop.permute.xlu0 %514
      %517 = vbcast.lane.b32.xlu0 %v466, 256
      %v518 = vpop.permute.xlu0 %517
      %s520 = sor.u32 256, 8
      %521 = vbcast.lane.b32.xlu0 %v466, %s520
      %v522 = vpop.permute.xlu0 %521
      %532 = vbcast.lane.b32.xlu0 %v459, 256
      %v533 = vpop.permute.xlu0 %532
      %s535 = sor.u32 256, 8
      %536 = vbcast.lane.b32.xlu0 %v459, %s535
      %v537 = vpop.permute.xlu0 %536
      %539 = vbcast.lane.b32.xlu0 %v460, 256
      %v540 = vpop.permute.xlu0 %539
      %s542 = sor.u32 256, 8
      %543 = vbcast.lane.b32.xlu0 %v460, %s542
      %v544 = vpop.permute.xlu0 %543
      %546 = vbcast.lane.b32.xlu0 %v461, 256
      %v547 = vpop.permute.xlu0 %546
      %s549 = sor.u32 256, 8
      %550 = vbcast.lane.b32.xlu0 %v461, %s549
      %v551 = vpop.permute.xlu0 %550
      %553 = vbcast.lane.b32.xlu0 %v462, 256
      %v554 = vpop.permute.xlu0 %553
      %s556 = sor.u32 256, 8
      %557 = vbcast.lane.b32.xlu0 %v462, %s556
      %v558 = vpop.permute.xlu0 %557
      %560 = vbcast.lane.b32.xlu0 %v463, 256
      %v561 = vpop.permute.xlu0 %560
      %s563 = sor.u32 256, 8
      %564 = vbcast.lane.b32.xlu0 %v463, %s563
      %v565 = vpop.permute.xlu0 %564
      %567 = vbcast.lane.b32.xlu0 %v464, 256
      %v568 = vpop.permute.xlu0 %567
      %s570 = sor.u32 256, 8
      %571 = vbcast.lane.b32.xlu0 %v464, %s570
      %v572 = vpop.permute.xlu0 %571
      %574 = vbcast.lane.b32.xlu0 %v465, 256
      %v575 = vpop.permute.xlu0 %574
      %s577 = sor.u32 256, 8
      %578 = vbcast.lane.b32.xlu0 %v465, %s577
      %v579 = vpop.permute.xlu0 %578
      %581 = vbcast.lane.b32.xlu0 %v466, 256
      %v582 = vpop.permute.xlu0 %581
      %s584 = sor.u32 256, 8
      %585 = vbcast.lane.b32.xlu0 %v466, %s584
      %v586 = vpop.permute.xlu0 %585
      %v603 = vmul.f32 %v317, %v533
      %v604 = vmul.f32 %v320, %v537
      %v605 = vmul.f32 %v323, %v540
      %v606 = vmul.f32 %v326, %v544
      %v607 = vmul.f32 %v329, %v547
      %v608 = vmul.f32 %v332, %v551
      %v609 = vmul.f32 %v335, %v554
      %v610 = vmul.f32 %v338, %v558
      %v611 = vmul.f32 %v341, %v561
      %v612 = vmul.f32 %v344, %v565
      %v613 = vmul.f32 %v347, %v568
      %v614 = vmul.f32 %v350, %v572
      %v615 = vmul.f32 %v353, %v575
      %v616 = vmul.f32 %v356, %v579
      %v617 = vmul.f32 %v359, %v582
      %v618 = vmul.f32 %v362, %v586
      %635 = vset.pattern.permute.xlu0 0
      %636 = vperm.xlu0 %635, %v603
      %v637 = vpop.permute.xlu0 %636
      %638 = vset.pattern.permute.xlu0 0
      %639 = vperm.xlu0 %638, %v604
      %v640 = vpop.permute.xlu0 %639
      %641 = vset.pattern.permute.xlu0 0
      %642 = vperm.xlu0 %641, %v605
      %v643 = vpop.permute.xlu0 %642
      %644 = vset.pattern.permute.xlu0 0
      %645 = vperm.xlu0 %644, %v606
      %v646 = vpop.permute.xlu0 %645
      %647 = vset.pattern.permute.xlu0 0
      %648 = vperm.xlu0 %647, %v607
      %v649 = vpop.permute.xlu0 %648
      %650 = vset.pattern.permute.xlu0 0
      %651 = vperm.xlu0 %650, %v608
      %v652 = vpop.permute.xlu0 %651
      %653 = vset.pattern.permute.xlu0 0
      %654 = vperm.xlu0 %653, %v609
      %v655 = vpop.permute.xlu0 %654
      %656 = vset.pattern.permute.xlu0 0
      %657 = vperm.xlu0 %656, %v610
      %v658 = vpop.permute.xlu0 %657
      %659 = vset.pattern.permute.xlu0 0
      %660 = vperm.xlu0 %659, %v611
      %v661 = vpop.permute.xlu0 %660
      %662 = vset.pattern.permute.xlu0 0
      %663 = vperm.xlu0 %662, %v612
      %v664 = vpop.permute.xlu0 %663
      %665 = vset.pattern.permute.xlu0 0
      %666 = vperm.xlu0 %665, %v613
      %v667 = vpop.permute.xlu0 %666
      %668 = vset.pattern.permute.xlu0 0
      %669 = vperm.xlu0 %668, %v614
      %v670 = vpop.permute.xlu0 %669
      %671 = vset.pattern.permute.xlu0 0
      %672 = vperm.xlu0 %671, %v615
      %v673 = vpop.permute.xlu0 %672
      %674 = vset.pattern.permute.xlu0 0
      %675 = vperm.xlu0 %674, %v616
      %v676 = vpop.permute.xlu0 %675
      %677 = vset.pattern.permute.xlu0 0
      %678 = vperm.xlu0 %677, %v617
      %v679 = vpop.permute.xlu0 %678
      %680 = vset.pattern.permute.xlu0 0
      %681 = vperm.xlu0 %680, %v618
      %v682 = vpop.permute.xlu0 %681
      %v683 = vlaneseq
      %v684 = vand.u32 %v683, 127
      %v685 = vlaneseq
      %v686 = vshrl.u32 %v685, 7
      %v687 = vsub.s32 %v684, %v686
      %v688 = vrot.slane %v637, %v687
      %v689 = vadd.s32 %v684, 4294967288
      %v690 = vlaneseq
      %v691 = vshrl.u32 %v690, 7
      %v692 = vsub.s32 %v689, %v691
      %v693 = vrot.slane %v640, %v692
      %vm694 = vcmask 130112
      %v695 = vsel %vm694, %v693, %v688
      %v696 = vlaneseq
      %v697 = vshrl.u32 %v696, 7
      %v698 = vsub.s32 %v684, %v697
      %v699 = vrot.slane %v643, %v698
      %v700 = vlaneseq
      %v701 = vshrl.u32 %v700, 7
      %v702 = vsub.s32 %v689, %v701
      %v703 = vrot.slane %v646, %v702
      %v704 = vsel %vm694, %v703, %v699
      %v705 = vlaneseq
      %v706 = vshrl.u32 %v705, 7
      %v707 = vsub.s32 %v684, %v706
      %v708 = vrot.slane %v649, %v707
      %v709 = vlaneseq
      %v710 = vshrl.u32 %v709, 7
      %v711 = vsub.s32 %v689, %v710
      %v712 = vrot.slane %v652, %v711
      %v713 = vsel %vm694, %v712, %v708
      %v714 = vlaneseq
      %v715 = vshrl.u32 %v714, 7
      %v716 = vsub.s32 %v684, %v715
      %v717 = vrot.slane %v655, %v716
      %v718 = vlaneseq
      %v719 = vshrl.u32 %v718, 7
      %v720 = vsub.s32 %v689, %v719
      %v721 = vrot.slane %v658, %v720
      %v722 = vsel %vm694, %v721, %v717
      %v723 = vlaneseq
      %v724 = vshrl.u32 %v723, 7
      %v725 = vsub.s32 %v684, %v724
      %v726 = vrot.slane %v661, %v725
      %v727 = vlaneseq
      %v728 = vshrl.u32 %v727, 7
      %v729 = vsub.s32 %v689, %v728
      %v730 = vrot.slane %v664, %v729
      %v731 = vsel %vm694, %v730, %v726
      %v732 = vlaneseq
      %v733 = vshrl.u32 %v732, 7
      %v734 = vsub.s32 %v684, %v733
      %v735 = vrot.slane %v667, %v734
      %v736 = vlaneseq
      %v737 = vshrl.u32 %v736, 7
      %v738 = vsub.s32 %v689, %v737
      %v739 = vrot.slane %v670, %v738
      %v740 = vsel %vm694, %v739, %v735
      %v741 = vlaneseq
      %v742 = vshrl.u32 %v741, 7
      %v743 = vsub.s32 %v684, %v742
      %v744 = vrot.slane %v673, %v743
      %v745 = vlaneseq
      %v746 = vshrl.u32 %v745, 7
      %v747 = vsub.s32 %v689, %v746
      %v748 = vrot.slane %v676, %v747
      %v749 = vsel %vm694, %v748, %v744
      %v750 = vlaneseq
      %v751 = vshrl.u32 %v750, 7
      %v752 = vsub.s32 %v684, %v751
      %v753 = vrot.slane %v679, %v752
      %v754 = vlaneseq
      %v755 = vshrl.u32 %v754, 7
      %v756 = vsub.s32 %v689, %v755
      %v757 = vrot.slane %v682, %v756
      %v758 = vsel %vm694, %v757, %v753
      %vm759 = vcmask 1041409
      %vm760 = vcmask 1042434
      %v761 = vsel %vm760, %v695, %v695
      %vm762 = vcmask 1043459
      %v763 = vsel %vm762, %v695, %v761
      %vm764 = vcmask 1044484
      %v765 = vsel %vm764, %v695, %v763
      %vm766 = vcmask 1045509
      %v767 = vsel %vm766, %v695, %v765
      %vm768 = vcmask 1046534
      %v769 = vsel %vm768, %v695, %v767
      %vm770 = vcmask 1047559
      %v771 = vsel %vm770, %v695, %v769
      %v772 = vsel %vm760, %v704, %v704
      %v773 = vsel %vm762, %v704, %v772
      %v774 = vsel %vm764, %v704, %v773
      %v775 = vsel %vm766, %v704, %v774
      %v776 = vsel %vm768, %v704, %v775
      %v777 = vsel %vm770, %v704, %v776
      %v778 = vsel %vm760, %v713, %v713
      %v779 = vsel %vm762, %v713, %v778
      %v780 = vsel %vm764, %v713, %v779
      %v781 = vsel %vm766, %v713, %v780
      %v782 = vsel %vm768, %v713, %v781
      %v783 = vsel %vm770, %v713, %v782
      %v784 = vsel %vm760, %v722, %v722
      %v785 = vsel %vm762, %v722, %v784
      %v786 = vsel %vm764, %v722, %v785
      %v787 = vsel %vm766, %v722, %v786
      %v788 = vsel %vm768, %v722, %v787
      %v789 = vsel %vm770, %v722, %v788
      %v790 = vsel %vm760, %v731, %v731
      %v791 = vsel %vm762, %v731, %v790
      %v792 = vsel %vm764, %v731, %v791
      %v793 = vsel %vm766, %v731, %v792
      %v794 = vsel %vm768, %v731, %v793
      %v795 = vsel %vm770, %v731, %v794
      %v796 = vsel %vm760, %v740, %v740
      %v797 = vsel %vm762, %v740, %v796
      %v798 = vsel %vm764, %v740, %v797
      %v799 = vsel %vm766, %v740, %v798
      %v800 = vsel %vm768, %v740, %v799
      %v801 = vsel %vm770, %v740, %v800
      %v802 = vsel %vm760, %v749, %v749
      %v803 = vsel %vm762, %v749, %v802
      %v804 = vsel %vm764, %v749, %v803
      %v805 = vsel %vm766, %v749, %v804
      %v806 = vsel %vm768, %v749, %v805
      %v807 = vsel %vm770, %v749, %v806
      %v808 = vsel %vm760, %v758, %v758
      %v809 = vsel %vm762, %v758, %v808
      %v810 = vsel %vm764, %v758, %v809
      %v811 = vsel %vm766, %v758, %v810
      %v812 = vsel %vm768, %v758, %v811
      %v813 = vsel %vm770, %v758, %v812
      %v822 = vmul.f32 %v298, %v771
      %v823 = vmul.f32 %v299, %v771
      %v824 = vmul.f32 %v300, %v777
      %v825 = vmul.f32 %v301, %v777
      %v826 = vmul.f32 %v302, %v783
      %v827 = vmul.f32 %v303, %v783
      %v828 = vmul.f32 %v304, %v789
      %v829 = vmul.f32 %v305, %v789
      %v830 = vmul.f32 %v306, %v795
      %v831 = vmul.f32 %v307, %v795
      %v832 = vmul.f32 %v308, %v801
      %v833 = vmul.f32 %v309, %v801
      %v834 = vmul.f32 %v310, %v807
      %v835 = vmul.f32 %v311, %v807
      %v836 = vmul.f32 %v312, %v813
      %v837 = vmul.f32 %v313, %v813
      %v838 = vsel %vm314, %v822, 0.0
      %839 = vadd.xlane.f32.xlu0 %v838
      %v840 = vpop.xlane.xlu0 %839
      %v841 = vsel %vm314, %v823, 0.0
      %842 = vadd.xlane.f32.xlu0 %v841
      %v843 = vpop.xlane.xlu0 %842
      %v844 = vsel %vm314, %v824, 0.0
      %845 = vadd.xlane.f32.xlu0 %v844
      %v846 = vpop.xlane.xlu0 %845
      %v847 = vsel %vm314, %v825, 0.0
      %848 = vadd.xlane.f32.xlu0 %v847
      %v849 = vpop.xlane.xlu0 %848
      %v850 = vsel %vm314, %v826, 0.0
      %851 = vadd.xlane.f32.xlu0 %v850
      %v852 = vpop.xlane.xlu0 %851
      %v853 = vsel %vm314, %v827, 0.0
      %854 = vadd.xlane.f32.xlu0 %v853
      %v855 = vpop.xlane.xlu0 %854
      %v856 = vsel %vm314, %v828, 0.0
      %857 = vadd.xlane.f32.xlu0 %v856
      %v858 = vpop.xlane.xlu0 %857
      %v859 = vsel %vm314, %v829, 0.0
      %860 = vadd.xlane.f32.xlu0 %v859
      %v861 = vpop.xlane.xlu0 %860
      %v862 = vsel %vm314, %v830, 0.0
      %863 = vadd.xlane.f32.xlu0 %v862
      %v864 = vpop.xlane.xlu0 %863
      %v865 = vsel %vm314, %v831, 0.0
      %866 = vadd.xlane.f32.xlu0 %v865
      %v867 = vpop.xlane.xlu0 %866
      %v868 = vsel %vm314, %v832, 0.0
      %869 = vadd.xlane.f32.xlu0 %v868
      %v870 = vpop.xlane.xlu0 %869
      %v871 = vsel %vm314, %v833, 0.0
      %872 = vadd.xlane.f32.xlu0 %v871
      %v873 = vpop.xlane.xlu0 %872
      %v874 = vsel %vm314, %v834, 0.0
      %875 = vadd.xlane.f32.xlu0 %v874
      %v876 = vpop.xlane.xlu0 %875
      %v877 = vsel %vm314, %v835, 0.0
      %878 = vadd.xlane.f32.xlu0 %v877
      %v879 = vpop.xlane.xlu0 %878
      %v880 = vsel %vm314, %v836, 0.0
      %881 = vadd.xlane.f32.xlu0 %v880
      %v882 = vpop.xlane.xlu0 %881
      %v883 = vsel %vm314, %v837, 0.0
      %884 = vadd.xlane.f32.xlu0 %v883
      %v885 = vpop.xlane.xlu0 %884
      %v886 = vmul.f32 %v840, %v435
      %v887 = vmul.f32 %v843, %v436
      %v888 = vmul.f32 %v846, %v437
      %v889 = vmul.f32 %v849, %v438
      %v890 = vmul.f32 %v852, %v439
      %v891 = vmul.f32 %v855, %v440
      %v892 = vmul.f32 %v858, %v441
      %v893 = vmul.f32 %v861, %v442
      %v894 = vmul.f32 %v864, %v443
      %v895 = vmul.f32 %v867, %v444
      %v896 = vmul.f32 %v870, %v445
      %v897 = vmul.f32 %v873, %v446
      %v898 = vmul.f32 %v876, %v447
      %v899 = vmul.f32 %v879, %v448
      %v900 = vmul.f32 %v882, %v449
      %v901 = vmul.f32 %v885, %v450
      %v902 = vld [vmem:[%s1] sm:$0x1]
      %v903 = vld [vmem:[%s2] sm:$0x1]
      %v905 = vlaneseq
      %v906 = vshrl.u32 %v905, 7
      %v907 = vsub.s32 0, %v906
      %v908 = vrot.slane %v902, %v907
      %v910 = vmul.f32 %v886, %v908
      %v911 = vmul.f32 %v887, %v908
      %v912 = vmul.f32 %v888, %v908
      %v913 = vmul.f32 %v889, %v908
      %v914 = vmul.f32 %v890, %v908
      %v915 = vmul.f32 %v891, %v908
      %v916 = vmul.f32 %v892, %v908
      %v917 = vmul.f32 %v893, %v908
      %v918 = vmul.f32 %v894, %v908
      %v919 = vmul.f32 %v895, %v908
      %v920 = vmul.f32 %v896, %v908
      %v921 = vmul.f32 %v897, %v908
      %v922 = vmul.f32 %v898, %v908
      %v923 = vmul.f32 %v899, %v908
      %v924 = vmul.f32 %v900, %v908
      %v925 = vmul.f32 %v901, %v908
      %v927 = vlaneseq
      %v928 = vshrl.u32 %v927, 7
      %v929 = vsub.s32 0, %v928
      %v930 = vrot.slane %v903, %v929
      %v932 = vadd.f32 %v910, %v930
      %v933 = vadd.f32 %v911, %v930
      %v934 = vadd.f32 %v912, %v930
      %v935 = vadd.f32 %v913, %v930
      %v936 = vadd.f32 %v914, %v930
      %v937 = vadd.f32 %v915, %v930
      %v938 = vadd.f32 %v916, %v930
      %v939 = vadd.f32 %v917, %v930
      %v940 = vadd.f32 %v918, %v930
      %v941 = vadd.f32 %v919, %v930
      %v942 = vadd.f32 %v920, %v930
      %v943 = vadd.f32 %v921, %v930
      %v944 = vadd.f32 %v922, %v930
      %v945 = vadd.f32 %v923, %v930
      %v946 = vadd.f32 %v924, %v930
      %v947 = vadd.f32 %v925, %v930
      %v948 = vmax.f32 %v932, 0.0
      %v949 = vmax.f32 %v933, 0.0
      %v950 = vmax.f32 %v934, 0.0
      %v951 = vmax.f32 %v935, 0.0
      %v952 = vmax.f32 %v936, 0.0
      %v953 = vmax.f32 %v937, 0.0
      %v954 = vmax.f32 %v938, 0.0
      %v955 = vmax.f32 %v939, 0.0
      %v956 = vmax.f32 %v940, 0.0
      %v957 = vmax.f32 %v941, 0.0
      %v958 = vmax.f32 %v942, 0.0
      %v959 = vmax.f32 %v943, 0.0
      %v960 = vmax.f32 %v944, 0.0
      %v961 = vmax.f32 %v945, 0.0
      %v962 = vmax.f32 %v946, 0.0
      %v963 = vmax.f32 %v947, 0.0
      %v964 = vmul.f32 %v948, %v469
      %v965 = vmul.f32 %v949, %v473
      %v966 = vmul.f32 %v950, %v476
      %v967 = vmul.f32 %v951, %v480
      %v968 = vmul.f32 %v952, %v483
      %v969 = vmul.f32 %v953, %v487
      %v970 = vmul.f32 %v954, %v490
      %v971 = vmul.f32 %v955, %v494
      %v972 = vmul.f32 %v956, %v497
      %v973 = vmul.f32 %v957, %v501
      %v974 = vmul.f32 %v958, %v504
      %v975 = vmul.f32 %v959, %v508
      %v976 = vmul.f32 %v960, %v511
      %v977 = vmul.f32 %v961, %v515
      %v978 = vmul.f32 %v962, %v518
      %v979 = vmul.f32 %v963, %v522
      %v981 = vsel %vm314, %v298, 0
      %v984 = vsel %vm314, %v299, 0
      %986 = vmatprep.subr.mxu0 0.0
      %987 = vmatpush1.msra.mxu0 0.0
      %988 = vmatprep.subr.mxu0 0.0
      %989 = vmatpush1.msra.mxu0 0.0
      %990 = vmatprep.subr.mxu0 0.0
      %991 = vmatpush1.msra.mxu0 0.0
      %992 = vmatprep.subr.mxu0 0.0
      %993 = vmatpush1.msra.mxu0 0.0
      %994 = vmatprep.subr.mxu0 0.0
      %995 = vmatpush1.msra.mxu0 0.0
      %996 = vmatprep.subr.mxu0 0.0
      %997 = vmatpush1.msra.mxu0 0.0
      %998 = vmatprep.subr.mxu0 0.0
      %999 = vmatpush1.msra.mxu0 0.0
      %1000 = vmatprep.subr.mxu0 0.0
      %1001 = vmatpush1.msra.mxu0 0.0
      %1002 = vmatprep.subr.mxu0 0.0
      %1003 = vmatpush1.msra.mxu0 0.0
      %1004 = vmatprep.subr.mxu0 0.0
      %1005 = vmatpush1.msra.mxu0 0.0
      %1006 = vmatprep.subr.mxu0 0.0
      %1007 = vmatpush1.msra.mxu0 0.0
      %1008 = vmatprep.subr.mxu0 0.0
      %1009 = vmatpush1.msra.mxu0 0.0
      %1010 = vmatprep.subr.mxu0 0.0
      %1011 = vmatpush1.msra.mxu0 0.0
      %1012 = vmatprep.subr.mxu0 0.0
      %1013 = vmatpush1.msra.mxu0 0.0
      %1014 = vmatprep.subr.mxu0 0.0
      %1015 = vmatpush1.msra.mxu0 %v965
      %1016 = vmatprep.subr.mxu0 0.0
      %1017 = vmatpush1.msra.mxu0 %v964
      %1018 = vmatprep.subr.mxu0 0.0
      %1019 = vmatpush2.msra.mxu0 0.0
      %1020 = vmatprep.subr.mxu0 0.0
      %1021 = vmatpush2.msra.mxu0 0.0
      %1022 = vmatprep.subr.mxu0 0.0
      %1023 = vmatpush2.msra.mxu0 0.0
      %1024 = vmatprep.subr.mxu0 0.0
      %1025 = vmatpush2.msra.mxu0 0.0
      %1026 = vmatprep.subr.mxu0 0.0
      %1027 = vmatpush2.msra.mxu0 0.0
      %1028 = vmatprep.subr.mxu0 0.0
      %1029 = vmatpush2.msra.mxu0 0.0
      %1030 = vmatprep.subr.mxu0 0.0
      %1031 = vmatpush2.msra.mxu0 0.0
      %1032 = vmatprep.subr.mxu0 0.0
      %1033 = vmatpush2.msra.mxu0 0.0
      %1034 = vmatprep.subr.mxu0 0.0
      %1035 = vmatpush2.msra.mxu0 0.0
      %1036 = vmatprep.subr.mxu0 0.0
      %1037 = vmatpush2.msra.mxu0 0.0
      %1038 = vmatprep.subr.mxu0 0.0
      %1039 = vmatpush2.msra.mxu0 0.0
      %1040 = vmatprep.subr.mxu0 0.0
      %1041 = vmatpush2.msra.mxu0 0.0
      %1042 = vmatprep.subr.mxu0 0.0
      %1043 = vmatpush2.msra.mxu0 0.0
      %1044 = vmatprep.subr.mxu0 0.0
      %1045 = vmatpush2.msra.mxu0 0.0
      %1046 = vmatprep.subr.mxu0 0.0
      %1047 = vmatpush2.msra.mxu0 0.0
      %1048 = vmatprep.subr.mxu0 0.0
      %1049 = vmatpush2.msra.mxu0 0.0
      %1050 = vmatprep.mubr.f32.mxu0 0.0
      %1051 = vmatmul.mubr.f32.gmra.mxu0 %v981
      %v1052 = vpop.f32.mrf.mxu0
      %v1053 = vadd.f32 0.0, %v1052
      %v1054 = vpop.f32.mrf.mxu0
      %1055 = vmatprep.mubr.f32.mxu0 0.0
      %1056 = vmatmul.mubr.f32.gmra.mxu0 %v984
      %v1057 = vpop.f32.mrf.mxu0
      %v1058 = vadd.f32 0.0, %v1057
      %v1059 = vpop.f32.mrf.mxu0
      %1060 = vdwg.mxu0
      %v1062 = vsel %vm314, %v300, 0
      %v1065 = vsel %vm314, %v301, 0
      %1067 = vmatprep.subr.mxu0 0.0
      %1068 = vmatpush1.msra.mxu0 0.0
      %1069 = vmatprep.subr.mxu0 0.0
      %1070 = vmatpush1.msra.mxu0 0.0
      %1071 = vmatprep.subr.mxu0 0.0
      %1072 = vmatpush1.msra.mxu0 0.0
      %1073 = vmatprep.subr.mxu0 0.0
      %1074 = vmatpush1.msra.mxu0 0.0
      %1075 = vmatprep.subr.mxu0 0.0
      %1076 = vmatpush1.msra.mxu0 0.0
      %1077 = vmatprep.subr.mxu0 0.0
      %1078 = vmatpush1.msra.mxu0 0.0
      %1079 = vmatprep.subr.mxu0 0.0
      %1080 = vmatpush1.msra.mxu0 0.0
      %1081 = vmatprep.subr.mxu0 0.0
      %1082 = vmatpush1.msra.mxu0 0.0
      %1083 = vmatprep.subr.mxu0 0.0
      %1084 = vmatpush1.msra.mxu0 0.0
      %1085 = vmatprep.subr.mxu0 0.0
      %1086 = vmatpush1.msra.mxu0 0.0
      %1087 = vmatprep.subr.mxu0 0.0
      %1088 = vmatpush1.msra.mxu0 0.0
      %1089 = vmatprep.subr.mxu0 0.0
      %1090 = vmatpush1.msra.mxu0 0.0
      %1091 = vmatprep.subr.mxu0 0.0
      %1092 = vmatpush1.msra.mxu0 0.0
      %1093 = vmatprep.subr.mxu0 0.0
      %1094 = vmatpush1.msra.mxu0 0.0
      %1095 = vmatprep.subr.mxu0 0.0
      %1096 = vmatpush1.msra.mxu0 %v967
      %1097 = vmatprep.subr.mxu0 0.0
      %1098 = vmatpush1.msra.mxu0 %v966
      %1099 = vmatprep.subr.mxu0 0.0
      %1100 = vmatpush2.msra.mxu0 0.0
      %1101 = vmatprep.subr.mxu0 0.0
      %1102 = vmatpush2.msra.mxu0 0.0
      %1103 = vmatprep.subr.mxu0 0.0
      %1104 = vmatpush2.msra.mxu0 0.0
      %1105 = vmatprep.subr.mxu0 0.0
      %1106 = vmatpush2.msra.mxu0 0.0
      %1107 = vmatprep.subr.mxu0 0.0
      %1108 = vmatpush2.msra.mxu0 0.0
      %1109 = vmatprep.subr.mxu0 0.0
      %1110 = vmatpush2.msra.mxu0 0.0
      %1111 = vmatprep.subr.mxu0 0.0
      %1112 = vmatpush2.msra.mxu0 0.0
      %1113 = vmatprep.subr.mxu0 0.0
      %1114 = vmatpush2.msra.mxu0 0.0
      %1115 = vmatprep.subr.mxu0 0.0
      %1116 = vmatpush2.msra.mxu0 0.0
      %1117 = vmatprep.subr.mxu0 0.0
      %1118 = vmatpush2.msra.mxu0 0.0
      %1119 = vmatprep.subr.mxu0 0.0
      %1120 = vmatpush2.msra.mxu0 0.0
      %1121 = vmatprep.subr.mxu0 0.0
      %1122 = vmatpush2.msra.mxu0 0.0
      %1123 = vmatprep.subr.mxu0 0.0
      %1124 = vmatpush2.msra.mxu0 0.0
      %1125 = vmatprep.subr.mxu0 0.0
      %1126 = vmatpush2.msra.mxu0 0.0
      %1127 = vmatprep.subr.mxu0 0.0
      %1128 = vmatpush2.msra.mxu0 0.0
      %1129 = vmatprep.subr.mxu0 0.0
      %1130 = vmatpush2.msra.mxu0 0.0
      %1131 = vmatprep.mubr.f32.mxu0 0.0
      %1132 = vmatmul.mubr.f32.gmra.mxu0 %v1062
      %v1133 = vpop.f32.mrf.mxu0
      %v1134 = vadd.f32 0.0, %v1133
      %v1135 = vpop.f32.mrf.mxu0
      %1136 = vmatprep.mubr.f32.mxu0 0.0
      %1137 = vmatmul.mubr.f32.gmra.mxu0 %v1065
      %v1138 = vpop.f32.mrf.mxu0
      %v1139 = vadd.f32 0.0, %v1138
      %v1140 = vpop.f32.mrf.mxu0
      %1141 = vdwg.mxu0
      %v1143 = vsel %vm314, %v302, 0
      %v1146 = vsel %vm314, %v303, 0
      %1148 = vmatprep.subr.mxu0 0.0
      %1149 = vmatpush1.msra.mxu0 0.0
      %1150 = vmatprep.subr.mxu0 0.0
      %1151 = vmatpush1.msra.mxu0 0.0
      %1152 = vmatprep.subr.mxu0 0.0
      %1153 = vmatpush1.msra.mxu0 0.0
      %1154 = vmatprep.subr.mxu0 0.0
      %1155 = vmatpush1.msra.mxu0 0.0
      %1156 = vmatprep.subr.mxu0 0.0
      %1157 = vmatpush1.msra.mxu0 0.0
      %1158 = vmatprep.subr.mxu0 0.0
      %1159 = vmatpush1.msra.mxu0 0.0
      %1160 = vmatprep.subr.mxu0 0.0
      %1161 = vmatpush1.msra.mxu0 0.0
      %1162 = vmatprep.subr.mxu0 0.0
      %1163 = vmatpush1.msra.mxu0 0.0
      %1164 = vmatprep.subr.mxu0 0.0
      %1165 = vmatpush1.msra.mxu0 0.0
      %1166 = vmatprep.subr.mxu0 0.0
      %1167 = vmatpush1.msra.mxu0 0.0
      %1168 = vmatprep.subr.mxu0 0.0
      %1169 = vmatpush1.msra.mxu0 0.0
      %1170 = vmatprep.subr.mxu0 0.0
      %1171 = vmatpush1.msra.mxu0 0.0
      %1172 = vmatprep.subr.mxu0 0.0
      %1173 = vmatpush1.msra.mxu0 0.0
      %1174 = vmatprep.subr.mxu0 0.0
      %1175 = vmatpush1.msra.mxu0 0.0
      %1176 = vmatprep.subr.mxu0 0.0
      %1177 = vmatpush1.msra.mxu0 %v969
      %1178 = vmatprep.subr.mxu0 0.0
      %1179 = vmatpush1.msra.mxu0 %v968
      %1180 = vmatprep.subr.mxu0 0.0
      %1181 = vmatpush2.msra.mxu0 0.0
      %1182 = vmatprep.subr.mxu0 0.0
      %1183 = vmatpush2.msra.mxu0 0.0
      %1184 = vmatprep.subr.mxu0 0.0
      %1185 = vmatpush2.msra.mxu0 0.0
      %1186 = vmatprep.subr.mxu0 0.0
      %1187 = vmatpush2.msra.mxu0 0.0
      %1188 = vmatprep.subr.mxu0 0.0
      %1189 = vmatpush2.msra.mxu0 0.0
      %1190 = vmatprep.subr.mxu0 0.0
      %1191 = vmatpush2.msra.mxu0 0.0
      %1192 = vmatprep.subr.mxu0 0.0
      %1193 = vmatpush2.msra.mxu0 0.0
      %1194 = vmatprep.subr.mxu0 0.0
      %1195 = vmatpush2.msra.mxu0 0.0
      %1196 = vmatprep.subr.mxu0 0.0
      %1197 = vmatpush2.msra.mxu0 0.0
      %1198 = vmatprep.subr.mxu0 0.0
      %1199 = vmatpush2.msra.mxu0 0.0
      %1200 = vmatprep.subr.mxu0 0.0
      %1201 = vmatpush2.msra.mxu0 0.0
      %1202 = vmatprep.subr.mxu0 0.0
      %1203 = vmatpush2.msra.mxu0 0.0
      %1204 = vmatprep.subr.mxu0 0.0
      %1205 = vmatpush2.msra.mxu0 0.0
      %1206 = vmatprep.subr.mxu0 0.0
      %1207 = vmatpush2.msra.mxu0 0.0
      %1208 = vmatprep.subr.mxu0 0.0
      %1209 = vmatpush2.msra.mxu0 0.0
      %1210 = vmatprep.subr.mxu0 0.0
      %1211 = vmatpush2.msra.mxu0 0.0
      %1212 = vmatprep.mubr.f32.mxu0 0.0
      %1213 = vmatmul.mubr.f32.gmra.mxu0 %v1143
      %v1214 = vpop.f32.mrf.mxu0
      %v1215 = vadd.f32 0.0, %v1214
      %v1216 = vpop.f32.mrf.mxu0
      %1217 = vmatprep.mubr.f32.mxu0 0.0
      %1218 = vmatmul.mubr.f32.gmra.mxu0 %v1146
      %v1219 = vpop.f32.mrf.mxu0
      %v1220 = vadd.f32 0.0, %v1219
      %v1221 = vpop.f32.mrf.mxu0
      %1222 = vdwg.mxu0
      %v1224 = vsel %vm314, %v304, 0
      %v1227 = vsel %vm314, %v305, 0
      %1229 = vmatprep.subr.mxu0 0.0
      %1230 = vmatpush1.msra.mxu0 0.0
      %1231 = vmatprep.subr.mxu0 0.0
      %1232 = vmatpush1.msra.mxu0 0.0
      %1233 = vmatprep.subr.mxu0 0.0
      %1234 = vmatpush1.msra.mxu0 0.0
      %1235 = vmatprep.subr.mxu0 0.0
      %1236 = vmatpush1.msra.mxu0 0.0
      %1237 = vmatprep.subr.mxu0 0.0
      %1238 = vmatpush1.msra.mxu0 0.0
      %1239 = vmatprep.subr.mxu0 0.0
      %1240 = vmatpush1.msra.mxu0 0.0
      %1241 = vmatprep.subr.mxu0 0.0
      %1242 = vmatpush1.msra.mxu0 0.0
      %1243 = vmatprep.subr.mxu0 0.0
      %1244 = vmatpush1.msra.mxu0 0.0
      %1245 = vmatprep.subr.mxu0 0.0
      %1246 = vmatpush1.msra.mxu0 0.0
      %1247 = vmatprep.subr.mxu0 0.0
      %1248 = vmatpush1.msra.mxu0 0.0
      %1249 = vmatprep.subr.mxu0 0.0
      %1250 = vmatpush1.msra.mxu0 0.0
      %1251 = vmatprep.subr.mxu0 0.0
      %1252 = vmatpush1.msra.mxu0 0.0
      %1253 = vmatprep.subr.mxu0 0.0
      %1254 = vmatpush1.msra.mxu0 0.0
      %1255 = vmatprep.subr.mxu0 0.0
      %1256 = vmatpush1.msra.mxu0 0.0
      %1257 = vmatprep.subr.mxu0 0.0
      %1258 = vmatpush1.msra.mxu0 %v971
      %1259 = vmatprep.subr.mxu0 0.0
      %1260 = vmatpush1.msra.mxu0 %v970
      %1261 = vmatprep.subr.mxu0 0.0
      %1262 = vmatpush2.msra.mxu0 0.0
      %1263 = vmatprep.subr.mxu0 0.0
      %1264 = vmatpush2.msra.mxu0 0.0
      %1265 = vmatprep.subr.mxu0 0.0
      %1266 = vmatpush2.msra.mxu0 0.0
      %1267 = vmatprep.subr.mxu0 0.0
      %1268 = vmatpush2.msra.mxu0 0.0
      %1269 = vmatprep.subr.mxu0 0.0
      %1270 = vmatpush2.msra.mxu0 0.0
      %1271 = vmatprep.subr.mxu0 0.0
      %1272 = vmatpush2.msra.mxu0 0.0
      %1273 = vmatprep.subr.mxu0 0.0
      %1274 = vmatpush2.msra.mxu0 0.0
      %1275 = vmatprep.subr.mxu0 0.0
      %1276 = vmatpush2.msra.mxu0 0.0
      %1277 = vmatprep.subr.mxu0 0.0
      %1278 = vmatpush2.msra.mxu0 0.0
      %1279 = vmatprep.subr.mxu0 0.0
      %1280 = vmatpush2.msra.mxu0 0.0
      %1281 = vmatprep.subr.mxu0 0.0
      %1282 = vmatpush2.msra.mxu0 0.0
      %1283 = vmatprep.subr.mxu0 0.0
      %1284 = vmatpush2.msra.mxu0 0.0
      %1285 = vmatprep.subr.mxu0 0.0
      %1286 = vmatpush2.msra.mxu0 0.0
      %1287 = vmatprep.subr.mxu0 0.0
      %1288 = vmatpush2.msra.mxu0 0.0
      %1289 = vmatprep.subr.mxu0 0.0
      %1290 = vmatpush2.msra.mxu0 0.0
      %1291 = vmatprep.subr.mxu0 0.0
      %1292 = vmatpush2.msra.mxu0 0.0
      %1293 = vmatprep.mubr.f32.mxu0 0.0
      %1294 = vmatmul.mubr.f32.gmra.mxu0 %v1224
      %v1295 = vpop.f32.mrf.mxu0
      %v1296 = vadd.f32 0.0, %v1295
      %v1297 = vpop.f32.mrf.mxu0
      %1298 = vmatprep.mubr.f32.mxu0 0.0
      %1299 = vmatmul.mubr.f32.gmra.mxu0 %v1227
      %v1300 = vpop.f32.mrf.mxu0
      %v1301 = vadd.f32 0.0, %v1300
      %v1302 = vpop.f32.mrf.mxu0
      %1303 = vdwg.mxu0
      %v1305 = vsel %vm314, %v306, 0
      %v1308 = vsel %vm314, %v307, 0
      %1310 = vmatprep.subr.mxu0 0.0
      %1311 = vmatpush1.msra.mxu0 0.0
      %1312 = vmatprep.subr.mxu0 0.0
      %1313 = vmatpush1.msra.mxu0 0.0
      %1314 = vmatprep.subr.mxu0 0.0
      %1315 = vmatpush1.msra.mxu0 0.0
      %1316 = vmatprep.subr.mxu0 0.0
      %1317 = vmatpush1.msra.mxu0 0.0
      %1318 = vmatprep.subr.mxu0 0.0
      %1319 = vmatpush1.msra.mxu0 0.0
      %1320 = vmatprep.subr.mxu0 0.0
      %1321 = vmatpush1.msra.mxu0 0.0
      %1322 = vmatprep.subr.mxu0 0.0
      %1323 = vmatpush1.msra.mxu0 0.0
      %1324 = vmatprep.subr.mxu0 0.0
      %1325 = vmatpush1.msra.mxu0 0.0
      %1326 = vmatprep.subr.mxu0 0.0
      %1327 = vmatpush1.msra.mxu0 0.0
      %1328 = vmatprep.subr.mxu0 0.0
      %1329 = vmatpush1.msra.mxu0 0.0
      %1330 = vmatprep.subr.mxu0 0.0
      %1331 = vmatpush1.msra.mxu0 0.0
      %1332 = vmatprep.subr.mxu0 0.0
      %1333 = vmatpush1.msra.mxu0 0.0
      %1334 = vmatprep.subr.mxu0 0.0
      %1335 = vmatpush1.msra.mxu0 0.0
      %1336 = vmatprep.subr.mxu0 0.0
      %1337 = vmatpush1.msra.mxu0 0.0
      %1338 = vmatprep.subr.mxu0 0.0
      %1339 = vmatpush1.msra.mxu0 %v973
      %1340 = vmatprep.subr.mxu0 0.0
      %1341 = vmatpush1.msra.mxu0 %v972
      %1342 = vmatprep.subr.mxu0 0.0
      %1343 = vmatpush2.msra.mxu0 0.0
      %1344 = vmatprep.subr.mxu0 0.0
      %1345 = vmatpush2.msra.mxu0 0.0
      %1346 = vmatprep.subr.mxu0 0.0
      %1347 = vmatpush2.msra.mxu0 0.0
      %1348 = vmatprep.subr.mxu0 0.0
      %1349 = vmatpush2.msra.mxu0 0.0
      %1350 = vmatprep.subr.mxu0 0.0
      %1351 = vmatpush2.msra.mxu0 0.0
      %1352 = vmatprep.subr.mxu0 0.0
      %1353 = vmatpush2.msra.mxu0 0.0
      %1354 = vmatprep.subr.mxu0 0.0
      %1355 = vmatpush2.msra.mxu0 0.0
      %1356 = vmatprep.subr.mxu0 0.0
      %1357 = vmatpush2.msra.mxu0 0.0
      %1358 = vmatprep.subr.mxu0 0.0
      %1359 = vmatpush2.msra.mxu0 0.0
      %1360 = vmatprep.subr.mxu0 0.0
      %1361 = vmatpush2.msra.mxu0 0.0
      %1362 = vmatprep.subr.mxu0 0.0
      %1363 = vmatpush2.msra.mxu0 0.0
      %1364 = vmatprep.subr.mxu0 0.0
      %1365 = vmatpush2.msra.mxu0 0.0
      %1366 = vmatprep.subr.mxu0 0.0
      %1367 = vmatpush2.msra.mxu0 0.0
      %1368 = vmatprep.subr.mxu0 0.0
      %1369 = vmatpush2.msra.mxu0 0.0
      %1370 = vmatprep.subr.mxu0 0.0
      %1371 = vmatpush2.msra.mxu0 0.0
      %1372 = vmatprep.subr.mxu0 0.0
      %1373 = vmatpush2.msra.mxu0 0.0
      %1374 = vmatprep.mubr.f32.mxu0 0.0
      %1375 = vmatmul.mubr.f32.gmra.mxu0 %v1305
      %v1376 = vpop.f32.mrf.mxu0
      %v1377 = vadd.f32 0.0, %v1376
      %v1378 = vpop.f32.mrf.mxu0
      %1379 = vmatprep.mubr.f32.mxu0 0.0
      %1380 = vmatmul.mubr.f32.gmra.mxu0 %v1308
      %v1381 = vpop.f32.mrf.mxu0
      %v1382 = vadd.f32 0.0, %v1381
      %v1383 = vpop.f32.mrf.mxu0
      %1384 = vdwg.mxu0
      %v1386 = vsel %vm314, %v308, 0
      %v1389 = vsel %vm314, %v309, 0
      %1391 = vmatprep.subr.mxu0 0.0
      %1392 = vmatpush1.msra.mxu0 0.0
      %1393 = vmatprep.subr.mxu0 0.0
      %1394 = vmatpush1.msra.mxu0 0.0
      %1395 = vmatprep.subr.mxu0 0.0
      %1396 = vmatpush1.msra.mxu0 0.0
      %1397 = vmatprep.subr.mxu0 0.0
      %1398 = vmatpush1.msra.mxu0 0.0
      %1399 = vmatprep.subr.mxu0 0.0
      %1400 = vmatpush1.msra.mxu0 0.0
      %1401 = vmatprep.subr.mxu0 0.0
      %1402 = vmatpush1.msra.mxu0 0.0
      %1403 = vmatprep.subr.mxu0 0.0
      %1404 = vmatpush1.msra.mxu0 0.0
      %1405 = vmatprep.subr.mxu0 0.0
      %1406 = vmatpush1.msra.mxu0 0.0
      %1407 = vmatprep.subr.mxu0 0.0
      %1408 = vmatpush1.msra.mxu0 0.0
      %1409 = vmatprep.subr.mxu0 0.0
      %1410 = vmatpush1.msra.mxu0 0.0
      %1411 = vmatprep.subr.mxu0 0.0
      %1412 = vmatpush1.msra.mxu0 0.0
      %1413 = vmatprep.subr.mxu0 0.0
      %1414 = vmatpush1.msra.mxu0 0.0
      %1415 = vmatprep.subr.mxu0 0.0
      %1416 = vmatpush1.msra.mxu0 0.0
      %1417 = vmatprep.subr.mxu0 0.0
      %1418 = vmatpush1.msra.mxu0 0.0
      %1419 = vmatprep.subr.mxu0 0.0
      %1420 = vmatpush1.msra.mxu0 %v975
      %1421 = vmatprep.subr.mxu0 0.0
      %1422 = vmatpush1.msra.mxu0 %v974
      %1423 = vmatprep.subr.mxu0 0.0
      %1424 = vmatpush2.msra.mxu0 0.0
      %1425 = vmatprep.subr.mxu0 0.0
      %1426 = vmatpush2.msra.mxu0 0.0
      %1427 = vmatprep.subr.mxu0 0.0
      %1428 = vmatpush2.msra.mxu0 0.0
      %1429 = vmatprep.subr.mxu0 0.0
      %1430 = vmatpush2.msra.mxu0 0.0
      %1431 = vmatprep.subr.mxu0 0.0
      %1432 = vmatpush2.msra.mxu0 0.0
      %1433 = vmatprep.subr.mxu0 0.0
      %1434 = vmatpush2.msra.mxu0 0.0
      %1435 = vmatprep.subr.mxu0 0.0
      %1436 = vmatpush2.msra.mxu0 0.0
      %1437 = vmatprep.subr.mxu0 0.0
      %1438 = vmatpush2.msra.mxu0 0.0
      %1439 = vmatprep.subr.mxu0 0.0
      %1440 = vmatpush2.msra.mxu0 0.0
      %1441 = vmatprep.subr.mxu0 0.0
      %1442 = vmatpush2.msra.mxu0 0.0
      %1443 = vmatprep.subr.mxu0 0.0
      %1444 = vmatpush2.msra.mxu0 0.0
      %1445 = vmatprep.subr.mxu0 0.0
      %1446 = vmatpush2.msra.mxu0 0.0
      %1447 = vmatprep.subr.mxu0 0.0
      %1448 = vmatpush2.msra.mxu0 0.0
      %1449 = vmatprep.subr.mxu0 0.0
      %1450 = vmatpush2.msra.mxu0 0.0
      %1451 = vmatprep.subr.mxu0 0.0
      %1452 = vmatpush2.msra.mxu0 0.0
      %1453 = vmatprep.subr.mxu0 0.0
      %1454 = vmatpush2.msra.mxu0 0.0
      %1455 = vmatprep.mubr.f32.mxu0 0.0
      %1456 = vmatmul.mubr.f32.gmra.mxu0 %v1386
      %v1457 = vpop.f32.mrf.mxu0
      %v1458 = vadd.f32 0.0, %v1457
      %v1459 = vpop.f32.mrf.mxu0
      %1460 = vmatprep.mubr.f32.mxu0 0.0
      %1461 = vmatmul.mubr.f32.gmra.mxu0 %v1389
      %v1462 = vpop.f32.mrf.mxu0
      %v1463 = vadd.f32 0.0, %v1462
      %v1464 = vpop.f32.mrf.mxu0
      %1465 = vdwg.mxu0
      %v1467 = vsel %vm314, %v310, 0
      %v1470 = vsel %vm314, %v311, 0
      %1472 = vmatprep.subr.mxu0 0.0
      %1473 = vmatpush1.msra.mxu0 0.0
      %1474 = vmatprep.subr.mxu0 0.0
      %1475 = vmatpush1.msra.mxu0 0.0
      %1476 = vmatprep.subr.mxu0 0.0
      %1477 = vmatpush1.msra.mxu0 0.0
      %1478 = vmatprep.subr.mxu0 0.0
      %1479 = vmatpush1.msra.mxu0 0.0
      %1480 = vmatprep.subr.mxu0 0.0
      %1481 = vmatpush1.msra.mxu0 0.0
      %1482 = vmatprep.subr.mxu0 0.0
      %1483 = vmatpush1.msra.mxu0 0.0
      %1484 = vmatprep.subr.mxu0 0.0
      %1485 = vmatpush1.msra.mxu0 0.0
      %1486 = vmatprep.subr.mxu0 0.0
      %1487 = vmatpush1.msra.mxu0 0.0
      %1488 = vmatprep.subr.mxu0 0.0
      %1489 = vmatpush1.msra.mxu0 0.0
      %1490 = vmatprep.subr.mxu0 0.0
      %1491 = vmatpush1.msra.mxu0 0.0
      %1492 = vmatprep.subr.mxu0 0.0
      %1493 = vmatpush1.msra.mxu0 0.0
      %1494 = vmatprep.subr.mxu0 0.0
      %1495 = vmatpush1.msra.mxu0 0.0
      %1496 = vmatprep.subr.mxu0 0.0
      %1497 = vmatpush1.msra.mxu0 0.0
      %1498 = vmatprep.subr.mxu0 0.0
      %1499 = vmatpush1.msra.mxu0 0.0
      %1500 = vmatprep.subr.mxu0 0.0
      %1501 = vmatpush1.msra.mxu0 %v977
      %1502 = vmatprep.subr.mxu0 0.0
      %1503 = vmatpush1.msra.mxu0 %v976
      %1504 = vmatprep.subr.mxu0 0.0
      %1505 = vmatpush2.msra.mxu0 0.0
      %1506 = vmatprep.subr.mxu0 0.0
      %1507 = vmatpush2.msra.mxu0 0.0
      %1508 = vmatprep.subr.mxu0 0.0
      %1509 = vmatpush2.msra.mxu0 0.0
      %1510 = vmatprep.subr.mxu0 0.0
      %1511 = vmatpush2.msra.mxu0 0.0
      %1512 = vmatprep.subr.mxu0 0.0
      %1513 = vmatpush2.msra.mxu0 0.0
      %1514 = vmatprep.subr.mxu0 0.0
      %1515 = vmatpush2.msra.mxu0 0.0
      %1516 = vmatprep.subr.mxu0 0.0
      %1517 = vmatpush2.msra.mxu0 0.0
      %1518 = vmatprep.subr.mxu0 0.0
      %1519 = vmatpush2.msra.mxu0 0.0
      %1520 = vmatprep.subr.mxu0 0.0
      %1521 = vmatpush2.msra.mxu0 0.0
      %1522 = vmatprep.subr.mxu0 0.0
      %1523 = vmatpush2.msra.mxu0 0.0
      %1524 = vmatprep.subr.mxu0 0.0
      %1525 = vmatpush2.msra.mxu0 0.0
      %1526 = vmatprep.subr.mxu0 0.0
      %1527 = vmatpush2.msra.mxu0 0.0
      %1528 = vmatprep.subr.mxu0 0.0
      %1529 = vmatpush2.msra.mxu0 0.0
      %1530 = vmatprep.subr.mxu0 0.0
      %1531 = vmatpush2.msra.mxu0 0.0
      %1532 = vmatprep.subr.mxu0 0.0
      %1533 = vmatpush2.msra.mxu0 0.0
      %1534 = vmatprep.subr.mxu0 0.0
      %1535 = vmatpush2.msra.mxu0 0.0
      %1536 = vmatprep.mubr.f32.mxu0 0.0
      %1537 = vmatmul.mubr.f32.gmra.mxu0 %v1467
      %v1538 = vpop.f32.mrf.mxu0
      %v1539 = vadd.f32 0.0, %v1538
      %v1540 = vpop.f32.mrf.mxu0
      %1541 = vmatprep.mubr.f32.mxu0 0.0
      %1542 = vmatmul.mubr.f32.gmra.mxu0 %v1470
      %v1543 = vpop.f32.mrf.mxu0
      %v1544 = vadd.f32 0.0, %v1543
      %v1545 = vpop.f32.mrf.mxu0
      %1546 = vdwg.mxu0
      %v1548 = vsel %vm314, %v312, 0
      %v1551 = vsel %vm314, %v313, 0
      %1553 = vmatprep.subr.mxu0 0.0
      %1554 = vmatpush1.msra.mxu0 0.0
      %1555 = vmatprep.subr.mxu0 0.0
      %1556 = vmatpush1.msra.mxu0 0.0
      %1557 = vmatprep.subr.mxu0 0.0
      %1558 = vmatpush1.msra.mxu0 0.0
      %1559 = vmatprep.subr.mxu0 0.0
      %1560 = vmatpush1.msra.mxu0 0.0
      %1561 = vmatprep.subr.mxu0 0.0
      %1562 = vmatpush1.msra.mxu0 0.0
      %1563 = vmatprep.subr.mxu0 0.0
      %1564 = vmatpush1.msra.mxu0 0.0
      %1565 = vmatprep.subr.mxu0 0.0
      %1566 = vmatpush1.msra.mxu0 0.0
      %1567 = vmatprep.subr.mxu0 0.0
      %1568 = vmatpush1.msra.mxu0 0.0
      %1569 = vmatprep.subr.mxu0 0.0
      %1570 = vmatpush1.msra.mxu0 0.0
      %1571 = vmatprep.subr.mxu0 0.0
      %1572 = vmatpush1.msra.mxu0 0.0
      %1573 = vmatprep.subr.mxu0 0.0
      %1574 = vmatpush1.msra.mxu0 0.0
      %1575 = vmatprep.subr.mxu0 0.0
      %1576 = vmatpush1.msra.mxu0 0.0
      %1577 = vmatprep.subr.mxu0 0.0
      %1578 = vmatpush1.msra.mxu0 0.0
      %1579 = vmatprep.subr.mxu0 0.0
      %1580 = vmatpush1.msra.mxu0 0.0
      %1581 = vmatprep.subr.mxu0 0.0
      %1582 = vmatpush1.msra.mxu0 %v979
      %1583 = vmatprep.subr.mxu0 0.0
      %1584 = vmatpush1.msra.mxu0 %v978
      %1585 = vmatprep.subr.mxu0 0.0
      %1586 = vmatpush2.msra.mxu0 0.0
      %1587 = vmatprep.subr.mxu0 0.0
      %1588 = vmatpush2.msra.mxu0 0.0
      %1589 = vmatprep.subr.mxu0 0.0
      %1590 = vmatpush2.msra.mxu0 0.0
      %1591 = vmatprep.subr.mxu0 0.0
      %1592 = vmatpush2.msra.mxu0 0.0
      %1593 = vmatprep.subr.mxu0 0.0
      %1594 = vmatpush2.msra.mxu0 0.0
      %1595 = vmatprep.subr.mxu0 0.0
      %1596 = vmatpush2.msra.mxu0 0.0
      %1597 = vmatprep.subr.mxu0 0.0
      %1598 = vmatpush2.msra.mxu0 0.0
      %1599 = vmatprep.subr.mxu0 0.0
      %1600 = vmatpush2.msra.mxu0 0.0
      %1601 = vmatprep.subr.mxu0 0.0
      %1602 = vmatpush2.msra.mxu0 0.0
      %1603 = vmatprep.subr.mxu0 0.0
      %1604 = vmatpush2.msra.mxu0 0.0
      %1605 = vmatprep.subr.mxu0 0.0
      %1606 = vmatpush2.msra.mxu0 0.0
      %1607 = vmatprep.subr.mxu0 0.0
      %1608 = vmatpush2.msra.mxu0 0.0
      %1609 = vmatprep.subr.mxu0 0.0
      %1610 = vmatpush2.msra.mxu0 0.0
      %1611 = vmatprep.subr.mxu0 0.0
      %1612 = vmatpush2.msra.mxu0 0.0
      %1613 = vmatprep.subr.mxu0 0.0
      %1614 = vmatpush2.msra.mxu0 0.0
      %1615 = vmatprep.subr.mxu0 0.0
      %1616 = vmatpush2.msra.mxu0 0.0
      %1617 = vmatprep.mubr.f32.mxu0 0.0
      %1618 = vmatmul.mubr.f32.gmra.mxu0 %v1548
      %v1619 = vpop.f32.mrf.mxu0
      %v1620 = vadd.f32 0.0, %v1619
      %v1621 = vpop.f32.mrf.mxu0
      %1622 = vmatprep.mubr.f32.mxu0 0.0
      %1623 = vmatmul.mubr.f32.gmra.mxu0 %v1551
      %v1624 = vpop.f32.mrf.mxu0
      %v1625 = vadd.f32 0.0, %v1624
      %v1626 = vpop.f32.mrf.mxu0
      %1627 = vdwg.mxu0
      %v1628 = vmul.f32 %v1053, %v435
      %v1629 = vmul.f32 %v1058, %v436
      %v1630 = vmul.f32 %v1134, %v437
      %v1631 = vmul.f32 %v1139, %v438
      %v1632 = vmul.f32 %v1215, %v439
      %v1633 = vmul.f32 %v1220, %v440
      %v1634 = vmul.f32 %v1296, %v441
      %v1635 = vmul.f32 %v1301, %v442
      %v1636 = vmul.f32 %v1377, %v443
      %v1637 = vmul.f32 %v1382, %v444
      %v1638 = vmul.f32 %v1458, %v445
      %v1639 = vmul.f32 %v1463, %v446
      %v1640 = vmul.f32 %v1539, %v447
      %v1641 = vmul.f32 %v1544, %v448
      %v1642 = vmul.f32 %v1620, %v449
      %v1643 = vmul.f32 %v1625, %v450
      %v1644 = vld [vmem:[%s3] sm:$0xff]
      %v1645 = vld [vmem:[%s3 + $0x8] sm:$0xff]
      %v1646 = vld [vmem:[%s3 + $0x10] sm:$0xff]
      %v1647 = vld [vmem:[%s3 + $0x18] sm:$0xff]
      %v1648 = vld [vmem:[%s4] sm:$0x1]
      %v1650 = vlaneseq
      %v1651 = vshrl.u32 %v1650, 7
      %v1652 = vsub.s32 0, %v1651
      %v1653 = vrot.slane %v1648, %v1652
      %vm1655 = vcmask 261120
      %v1657 = vsel %vm1655, %v1628, 0
      %v1660 = vsel %vm1655, %v1629, 0
      %v1663 = vsel %vm1655, %v1630, 0
      %v1666 = vsel %vm1655, %v1631, 0
      %v1669 = vsel %vm1655, %v1632, 0
      %v1672 = vsel %vm1655, %v1633, 0
      %v1675 = vsel %vm1655, %v1634, 0
      %v1678 = vsel %vm1655, %v1635, 0
      %v1681 = vsel %vm1655, %v1636, 0
      %v1684 = vsel %vm1655, %v1637, 0
      %v1687 = vsel %vm1655, %v1638, 0
      %v1690 = vsel %vm1655, %v1639, 0
      %v1693 = vsel %vm1655, %v1640, 0
      %v1696 = vsel %vm1655, %v1641, 0
      %v1699 = vsel %vm1655, %v1642, 0
      %v1702 = vsel %vm1655, %v1643, 0
      %1704 = vmatprep.subr.mxu0 0.0
      %1705 = vmatpush1.msra.mxu0 0.0
      %1706 = vmatprep.subr.mxu0 0.0
      %1707 = vmatpush1.msra.mxu0 0.0
      %1708 = vmatprep.subr.mxu0 0.0
      %1709 = vmatpush1.msra.mxu0 0.0
      %1710 = vmatprep.subr.mxu0 0.0
      %1711 = vmatpush1.msra.mxu0 0.0
      %1712 = vmatprep.subr.mxu0 0.0
      %1713 = vmatpush1.msra.mxu0 0.0
      %1714 = vmatprep.subr.mxu0 0.0
      %1715 = vmatpush1.msra.mxu0 0.0
      %1716 = vmatprep.subr.mxu0 0.0
      %1717 = vmatpush1.msra.mxu0 0.0
      %1718 = vmatprep.subr.mxu0 0.0
      %1719 = vmatpush1.msra.mxu0 0.0
      %1720 = vmatprep.subr.mxu0 0.0
      %1721 = vmatpush1.msra.mxu0 0.0
      %1722 = vmatprep.subr.mxu0 0.0
      %1723 = vmatpush1.msra.mxu0 0.0
      %1724 = vmatprep.subr.mxu0 0.0
      %1725 = vmatpush1.msra.mxu0 0.0
      %1726 = vmatprep.subr.mxu0 0.0
      %1727 = vmatpush1.msra.mxu0 0.0
      %1728 = vmatprep.subr.mxu0 0.0
      %1729 = vmatpush1.msra.mxu0 %v1647
      %1730 = vmatprep.subr.mxu0 0.0
      %1731 = vmatpush1.msra.mxu0 %v1646
      %1732 = vmatprep.subr.mxu0 0.0
      %1733 = vmatpush1.msra.mxu0 %v1645
      %1734 = vmatprep.subr.mxu0 0.0
      %1735 = vmatpush1.msra.mxu0 %v1644
      %1736 = vmatprep.subr.mxu0 0.0
      %1737 = vmatpush2.msra.mxu0 0.0
      %1738 = vmatprep.subr.mxu0 0.0
      %1739 = vmatpush2.msra.mxu0 0.0
      %1740 = vmatprep.subr.mxu0 0.0
      %1741 = vmatpush2.msra.mxu0 0.0
      %1742 = vmatprep.subr.mxu0 0.0
      %1743 = vmatpush2.msra.mxu0 0.0
      %1744 = vmatprep.subr.mxu0 0.0
      %1745 = vmatpush2.msra.mxu0 0.0
      %1746 = vmatprep.subr.mxu0 0.0
      %1747 = vmatpush2.msra.mxu0 0.0
      %1748 = vmatprep.subr.mxu0 0.0
      %1749 = vmatpush2.msra.mxu0 0.0
      %1750 = vmatprep.subr.mxu0 0.0
      %1751 = vmatpush2.msra.mxu0 0.0
      %1752 = vmatprep.subr.mxu0 0.0
      %1753 = vmatpush2.msra.mxu0 0.0
      %1754 = vmatprep.subr.mxu0 0.0
      %1755 = vmatpush2.msra.mxu0 0.0
      %1756 = vmatprep.subr.mxu0 0.0
      %1757 = vmatpush2.msra.mxu0 0.0
      %1758 = vmatprep.subr.mxu0 0.0
      %1759 = vmatpush2.msra.mxu0 0.0
      %1760 = vmatprep.subr.mxu0 0.0
      %1761 = vmatpush2.msra.mxu0 0.0
      %1762 = vmatprep.subr.mxu0 0.0
      %1763 = vmatpush2.msra.mxu0 0.0
      %1764 = vmatprep.subr.mxu0 0.0
      %1765 = vmatpush2.msra.mxu0 0.0
      %1766 = vmatprep.subr.mxu0 0.0
      %1767 = vmatpush2.msra.mxu0 0.0
      %1768 = vmatprep.mubr.f32.mxu0 0.0
      %1769 = vmatmul.mubr.f32.gmra.mxu0 %v1657
      %v1770 = vpop.f32.mrf.mxu0
      %v1771 = vadd.f32 %v1653, %v1770
      %v1772 = vpop.f32.mrf.mxu0
      %1773 = vmatprep.mubr.f32.mxu0 0.0
      %1774 = vmatmul.mubr.f32.gmra.mxu0 %v1660
      %v1775 = vpop.f32.mrf.mxu0
      %v1776 = vadd.f32 %v1653, %v1775
      %v1777 = vpop.f32.mrf.mxu0
      %1778 = vmatprep.mubr.f32.mxu0 0.0
      %1779 = vmatmul.mubr.f32.gmra.mxu0 %v1663
      %v1780 = vpop.f32.mrf.mxu0
      %v1781 = vadd.f32 %v1653, %v1780
      %v1782 = vpop.f32.mrf.mxu0
      %1783 = vmatprep.mubr.f32.mxu0 0.0
      %1784 = vmatmul.mubr.f32.gmra.mxu0 %v1666
      %v1785 = vpop.f32.mrf.mxu0
      %v1786 = vadd.f32 %v1653, %v1785
      %v1787 = vpop.f32.mrf.mxu0
      %1788 = vmatprep.mubr.f32.mxu0 0.0
      %1789 = vmatmul.mubr.f32.gmra.mxu0 %v1669
      %v1790 = vpop.f32.mrf.mxu0
      %v1791 = vadd.f32 %v1653, %v1790
      %v1792 = vpop.f32.mrf.mxu0
      %1793 = vmatprep.mubr.f32.mxu0 0.0
      %1794 = vmatmul.mubr.f32.gmra.mxu0 %v1672
      %v1795 = vpop.f32.mrf.mxu0
      %v1796 = vadd.f32 %v1653, %v1795
      %v1797 = vpop.f32.mrf.mxu0
      %1798 = vmatprep.mubr.f32.mxu0 0.0
      %1799 = vmatmul.mubr.f32.gmra.mxu0 %v1675
      %v1800 = vpop.f32.mrf.mxu0
      %v1801 = vadd.f32 %v1653, %v1800
      %v1802 = vpop.f32.mrf.mxu0
      %1803 = vmatprep.mubr.f32.mxu0 0.0
      %1804 = vmatmul.mubr.f32.gmra.mxu0 %v1678
      %v1805 = vpop.f32.mrf.mxu0
      %v1806 = vadd.f32 %v1653, %v1805
      %v1807 = vpop.f32.mrf.mxu0
      %1808 = vmatprep.mubr.f32.mxu0 0.0
      %1809 = vmatmul.mubr.f32.gmra.mxu0 %v1681
      %v1810 = vpop.f32.mrf.mxu0
      %v1811 = vadd.f32 %v1653, %v1810
      %v1812 = vpop.f32.mrf.mxu0
      %1813 = vmatprep.mubr.f32.mxu0 0.0
      %1814 = vmatmul.mubr.f32.gmra.mxu0 %v1684
      %v1815 = vpop.f32.mrf.mxu0
      %v1816 = vadd.f32 %v1653, %v1815
      %v1817 = vpop.f32.mrf.mxu0
      %1818 = vmatprep.mubr.f32.mxu0 0.0
      %1819 = vmatmul.mubr.f32.gmra.mxu0 %v1687
      %v1820 = vpop.f32.mrf.mxu0
      %v1821 = vadd.f32 %v1653, %v1820
      %v1822 = vpop.f32.mrf.mxu0
      %1823 = vmatprep.mubr.f32.mxu0 0.0
      %1824 = vmatmul.mubr.f32.gmra.mxu0 %v1690
      %v1825 = vpop.f32.mrf.mxu0
      %v1826 = vadd.f32 %v1653, %v1825
      %v1827 = vpop.f32.mrf.mxu0
      %1828 = vmatprep.mubr.f32.mxu0 0.0
      %1829 = vmatmul.mubr.f32.gmra.mxu0 %v1693
      %v1830 = vpop.f32.mrf.mxu0
      %v1831 = vadd.f32 %v1653, %v1830
      %v1832 = vpop.f32.mrf.mxu0
      %1833 = vmatprep.mubr.f32.mxu0 0.0
      %1834 = vmatmul.mubr.f32.gmra.mxu0 %v1696
      %v1835 = vpop.f32.mrf.mxu0
      %v1836 = vadd.f32 %v1653, %v1835
      %v1837 = vpop.f32.mrf.mxu0
      %1838 = vmatprep.mubr.f32.mxu0 0.0
      %1839 = vmatmul.mubr.f32.gmra.mxu0 %v1699
      %v1840 = vpop.f32.mrf.mxu0
      %v1841 = vadd.f32 %v1653, %v1840
      %v1842 = vpop.f32.mrf.mxu0
      %1843 = vmatprep.mubr.f32.mxu0 0.0
      %1844 = vmatmul.mubr.f32.gmra.mxu0 %v1702
      %v1845 = vpop.f32.mrf.mxu0
      %v1846 = vadd.f32 %v1653, %v1845
      %v1847 = vpop.f32.mrf.mxu0
      %1848 = vdwg.mxu0
      %v1849 = vmax.f32 %v1771, 0.0
      %v1850 = vmax.f32 %v1776, 0.0
      %v1851 = vmax.f32 %v1781, 0.0
      %v1852 = vmax.f32 %v1786, 0.0
      %v1853 = vmax.f32 %v1791, 0.0
      %v1854 = vmax.f32 %v1796, 0.0
      %v1855 = vmax.f32 %v1801, 0.0
      %v1856 = vmax.f32 %v1806, 0.0
      %v1857 = vmax.f32 %v1811, 0.0
      %v1858 = vmax.f32 %v1816, 0.0
      %v1859 = vmax.f32 %v1821, 0.0
      %v1860 = vmax.f32 %v1826, 0.0
      %v1861 = vmax.f32 %v1831, 0.0
      %v1862 = vmax.f32 %v1836, 0.0
      %v1863 = vmax.f32 %v1841, 0.0
      %v1864 = vmax.f32 %v1846, 0.0
      %v1865 = vsel %vm1655, %v1849, 0.0
      %v1866 = vsel %vm1655, %v1850, 0.0
      %v1867 = vadd.f32 %v1865, %v1866
      %v1868 = vrot.slane %v1867, 4
      %v1869 = vadd.f32 %v1867, %v1868
      %v1870 = vrot.slane %v1869, 2
      %v1871 = vadd.f32 %v1869, %v1870
      %v1872 = vrot.slane %v1871, 1
      %v1873 = vadd.f32 %v1871, %v1872
      %v1874 = vsel %vm1655, %v1851, 0.0
      %v1875 = vsel %vm1655, %v1852, 0.0
      %v1876 = vadd.f32 %v1874, %v1875
      %v1877 = vrot.slane %v1876, 4
      %v1878 = vadd.f32 %v1876, %v1877
      %v1879 = vrot.slane %v1878, 2
      %v1880 = vadd.f32 %v1878, %v1879
      %v1881 = vrot.slane %v1880, 1
      %v1882 = vadd.f32 %v1880, %v1881
      %v1883 = vsel %vm1655, %v1853, 0.0
      %v1884 = vsel %vm1655, %v1854, 0.0
      %v1885 = vadd.f32 %v1883, %v1884
      %v1886 = vrot.slane %v1885, 4
      %v1887 = vadd.f32 %v1885, %v1886
      %v1888 = vrot.slane %v1887, 2
      %v1889 = vadd.f32 %v1887, %v1888
      %v1890 = vrot.slane %v1889, 1
      %v1891 = vadd.f32 %v1889, %v1890
      %v1892 = vsel %vm1655, %v1855, 0.0
      %v1893 = vsel %vm1655, %v1856, 0.0
      %v1894 = vadd.f32 %v1892, %v1893
      %v1895 = vrot.slane %v1894, 4
      %v1896 = vadd.f32 %v1894, %v1895
      %v1897 = vrot.slane %v1896, 2
      %v1898 = vadd.f32 %v1896, %v1897
      %v1899 = vrot.slane %v1898, 1
      %v1900 = vadd.f32 %v1898, %v1899
      %v1901 = vsel %vm1655, %v1857, 0.0
      %v1902 = vsel %vm1655, %v1858, 0.0
      %v1903 = vadd.f32 %v1901, %v1902
      %v1904 = vrot.slane %v1903, 4
      %v1905 = vadd.f32 %v1903, %v1904
      %v1906 = vrot.slane %v1905, 2
      %v1907 = vadd.f32 %v1905, %v1906
      %v1908 = vrot.slane %v1907, 1
      %v1909 = vadd.f32 %v1907, %v1908
      %v1910 = vsel %vm1655, %v1859, 0.0
      %v1911 = vsel %vm1655, %v1860, 0.0
      %v1912 = vadd.f32 %v1910, %v1911
      %v1913 = vrot.slane %v1912, 4
      %v1914 = vadd.f32 %v1912, %v1913
      %v1915 = vrot.slane %v1914, 2
      %v1916 = vadd.f32 %v1914, %v1915
      %v1917 = vrot.slane %v1916, 1
      %v1918 = vadd.f32 %v1916, %v1917
      %v1919 = vsel %vm1655, %v1861, 0.0
      %v1920 = vsel %vm1655, %v1862, 0.0
      %v1921 = vadd.f32 %v1919, %v1920
      %v1922 = vrot.slane %v1921, 4
      %v1923 = vadd.f32 %v1921, %v1922
      %v1924 = vrot.slane %v1923, 2
      %v1925 = vadd.f32 %v1923, %v1924
      %v1926 = vrot.slane %v1925, 1
      %v1927 = vadd.f32 %v1925, %v1926
      %v1928 = vsel %vm1655, %v1863, 0.0
      %v1929 = vsel %vm1655, %v1864, 0.0
      %v1930 = vadd.f32 %v1928, %v1929
      %v1931 = vrot.slane %v1930, 4
      %v1932 = vadd.f32 %v1930, %v1931
      %v1933 = vrot.slane %v1932, 2
      %v1934 = vadd.f32 %v1932, %v1933
      %v1935 = vrot.slane %v1934, 1
      %v1936 = vadd.f32 %v1934, %v1935
      %v1937 = vld [vmem:[%s5] sm:$0xff]
      %v1938 = vld [vmem:[%s5 + $0x8] sm:$0xff]
      %v1939 = vld [vmem:[%s5 + $0x10] sm:$0xff]
      %v1940 = vld [vmem:[%s5 + $0x18] sm:$0xff]
      %v1949 = vsel %vm759, %v1882, %v1873
      %v1950 = vsel %vm760, %v1891, %v1949
      %v1951 = vsel %vm762, %v1900, %v1950
      %v1952 = vsel %vm764, %v1909, %v1951
      %v1953 = vsel %vm766, %v1918, %v1952
      %v1954 = vsel %vm768, %v1927, %v1953
      %v1955 = vsel %vm770, %v1936, %v1954
      %v1956 = vsel %vm1655, %v1955, 0
      %1958 = vmatprep.subr.mxu0 0.0
      %1959 = vmatpush1.msra.mxu0 0.0
      %1960 = vmatprep.subr.mxu0 0.0
      %1961 = vmatpush1.msra.mxu0 0.0
      %1962 = vmatprep.subr.mxu0 0.0
      %1963 = vmatpush1.msra.mxu0 0.0
      %1964 = vmatprep.subr.mxu0 0.0
      %1965 = vmatpush1.msra.mxu0 0.0
      %1966 = vmatprep.subr.mxu0 0.0
      %1967 = vmatpush1.msra.mxu0 0.0
      %1968 = vmatprep.subr.mxu0 0.0
      %1969 = vmatpush1.msra.mxu0 0.0
      %1970 = vmatprep.subr.mxu0 0.0
      %1971 = vmatpush1.msra.mxu0 0.0
      %1972 = vmatprep.subr.mxu0 0.0
      %1973 = vmatpush1.msra.mxu0 0.0
      %1974 = vmatprep.subr.mxu0 0.0
      %1975 = vmatpush1.msra.mxu0 0.0
      %1976 = vmatprep.subr.mxu0 0.0
      %1977 = vmatpush1.msra.mxu0 0.0
      %1978 = vmatprep.subr.mxu0 0.0
      %1979 = vmatpush1.msra.mxu0 0.0
      %1980 = vmatprep.subr.mxu0 0.0
      %1981 = vmatpush1.msra.mxu0 0.0
      %1982 = vmatprep.subr.mxu0 0.0
      %1983 = vmatpush1.msra.mxu0 %v1940
      %1984 = vmatprep.subr.mxu0 0.0
      %1985 = vmatpush1.msra.mxu0 %v1939
      %1986 = vmatprep.subr.mxu0 0.0
      %1987 = vmatpush1.msra.mxu0 %v1938
      %1988 = vmatprep.subr.mxu0 0.0
      %1989 = vmatpush1.msra.mxu0 %v1937
      %1990 = vmatprep.subr.mxu0 0.0
      %1991 = vmatpush2.msra.mxu0 0.0
      %1992 = vmatprep.subr.mxu0 0.0
      %1993 = vmatpush2.msra.mxu0 0.0
      %1994 = vmatprep.subr.mxu0 0.0
      %1995 = vmatpush2.msra.mxu0 0.0
      %1996 = vmatprep.subr.mxu0 0.0
      %1997 = vmatpush2.msra.mxu0 0.0
      %1998 = vmatprep.subr.mxu0 0.0
      %1999 = vmatpush2.msra.mxu0 0.0
      %2000 = vmatprep.subr.mxu0 0.0
      %2001 = vmatpush2.msra.mxu0 0.0
      %2002 = vmatprep.subr.mxu0 0.0
      %2003 = vmatpush2.msra.mxu0 0.0
      %2004 = vmatprep.subr.mxu0 0.0
      %2005 = vmatpush2.msra.mxu0 0.0
      %2006 = vmatprep.subr.mxu0 0.0
      %2007 = vmatpush2.msra.mxu0 0.0
      %2008 = vmatprep.subr.mxu0 0.0
      %2009 = vmatpush2.msra.mxu0 0.0
      %2010 = vmatprep.subr.mxu0 0.0
      %2011 = vmatpush2.msra.mxu0 0.0
      %2012 = vmatprep.subr.mxu0 0.0
      %2013 = vmatpush2.msra.mxu0 0.0
      %2014 = vmatprep.subr.mxu0 0.0
      %2015 = vmatpush2.msra.mxu0 0.0
      %2016 = vmatprep.subr.mxu0 0.0
      %2017 = vmatpush2.msra.mxu0 0.0
      %2018 = vmatprep.subr.mxu0 0.0
      %2019 = vmatpush2.msra.mxu0 0.0
      %2020 = vmatprep.subr.mxu0 0.0
      %2021 = vmatpush2.msra.mxu0 0.0
      %2022 = vmatprep.mubr.f32.mxu0 0.0
      %2023 = vmatmul.mubr.f32.gmra.mxu0 %v1956
      %v2024 = vpop.f32.mrf.mxu0
      %v2025 = vadd.f32 0.0, %v2024
      %v2026 = vpop.f32.mrf.mxu0
      %2027 = vdwg.mxu0
      %v2028 = vmul.f32 %v2025, 0.0625
      %v2029 = vld [vmem:[%s6] sm:$0x1]
      %v2031 = vlaneseq
      %v2032 = vshrl.u32 %v2031, 7
      %v2033 = vsub.s32 0, %v2032
      %v2034 = vrot.slane %v2029, %v2033
      %v2036 = vadd.f32 %v2028, %v2034
      %vm2037 = vcmask 31744
      %2038 = vst.msk [vmem:[%s281] sm:$0xff] %vm2037, %v2036
      %p2039 = scmp.lt.s32.totalorder %s18, 2
      %s2040 = scalar_select %p2039, %s18, 2
      %s2041 = smul.addr %s2040, 8
      %s2042 = scalar_lea.vmem %s7, %s2041
      // Predicated region
      $region49: #{tpu_custom_call.1} parent=47 // pred_check
        %p2043 = pneg %p188
      $region50: #{tpu_custom_call.1} parent=47 // pred_check_branch
        %2045 = sbr.rel (%p2043) target = $region52
      $region51: #{tpu_custom_call.1} parent=47 // pred_region
        _
      $region52: #{tpu_custom_call.1} parent=47 // pred_fallthru
        _
    $region48: #{tpu_custom_call.1} parent=5 // pred_fallthru
      _
    %p2046 = scmp.le.s32.totalorder 2, %s13
    // Predicated region
    $region53: #{tpu_custom_call.1} parent=5 // pred_check
      %p2047 = pneg %p2046
    $region54: #{tpu_custom_call.1} parent=5 // pred_check_branch
      %2049 = sbr.rel (%p2047) target = $region56
    $region55: #{tpu_custom_call.1} parent=5 // pred_region
      %s2050 = ssub.s32 %s13, 2
      // Predicated region
      $region57: #{tpu_custom_call.1} parent=55 // pred_check
        %p2051 = pneg %p194
      $region58: #{tpu_custom_call.1} parent=55 // pred_check_branch
        %2053 = sbr.rel (%p2051) target = $region60
      $region59: #{tpu_custom_call.1} parent=55 // pred_region
        %p2054 = scmp.lt.s32.totalorder %s19, 2
        %s2055 = scalar_select %p2054, %s19, 2
        %s2056 = smul.addr %s2055, 8
        %s2057 = scalar_lea.vmem %s7, %s2056
      $region60: #{tpu_custom_call.1} parent=55 // pred_fallthru
        _
    $region56: #{tpu_custom_call.1} parent=5 // pred_fallthru
      _
  $region6: #{tpu_custom_call.1} parent=0 // loop_footer
    %s17 = sadd.s32 1, %s13
  $region7: #{tpu_custom_call.1} parent=0 // loop_footer_branch
    %12 = sbr.rel target = $region3
  $region8: #{tpu_custom_call.1} parent=0 // loop_exit
    _

</llo_original>
